<compile_context>
chip_gen: v7x
topology: tpu7x:2x2x1
jax: 0.10.0
libtpu: 0.0.40
codegen_flags: <defaults>
</compile_context>

<pallas_src>
import functools

import jax
import jax.numpy as jnp
from jax import lax
from jax.experimental import pallas as pl
from jax.experimental.pallas import tpu as pltpu

# ---- model hyper-parameters (mirrors the PyTorch module, at small/test sizes) ----
INPUT_DIM = 1
HIDDEN = 32                 # hidden_dim (multiple of 32 so 4*H = 128 lanes)
OUTPUT_DIM = 1
OUTPUT_LEN = 100
OUT_FEATURES = OUTPUT_LEN * OUTPUT_DIM   # 100
OUT_PAD = 128               # lane-dense padded FC output width
NUM_LAYERS = 2
BATCH = 2
SEQ = 8
# NOTE: dropout (p=0.153248867) is applied only in training mode; forward here is
# inference-mode, so dropout (inter-layer LSTM dropout and self.dropout) is identity.
# TODO(synk): training-mode dropout (pltpu.prng_random_bits mask) not implemented.


def seq_lstm_kernel(xw_ref,     # (T, B, 4H) precomputed layer-0 input term + bias
                    whh0_ref,   # (H, 4H)    layer-0 recurrent weights (transposed)
                    wih1_ref,   # (H, 4H)    layer-1 input weights (transposed)
                    whh1_ref,   # (H, 4H)    layer-1 recurrent weights (transposed)
                    b1_ref,     # (1, 4H)    layer-1 b_ih + b_hh
                    wfc_ref,    # (H, OUT_PAD) fc weight (transposed, zero-padded)
                    bfc_ref,    # (1, OUT_PAD) fc bias (zero-padded)
                    out_ref):   # (B, OUT_PAD)
    T, B, G = xw_ref.shape      # G = 4H
    H = G // 4

    # --- hoisted out of the time loop: weights, bias broadcast, gate lane-mask ---
    whh0 = whh0_ref[...]                                     # (H, 4H)
    wih1 = wih1_ref[...]                                     # (H, 4H)
    whh1 = whh1_ref[...]                                     # (H, 4H)
    b1 = jnp.broadcast_to(b1_ref[...], (B, G))               # (B, 4H)
    lane = lax.broadcasted_iota(jnp.int32, (B, G), 1)
    g_mask = (lane >= 2 * H) & (lane < 3 * H)                # tanh lanes (g gate)

    def gate_act(gates):
        # PyTorch gate order i, f, g, o. One EUP tanh over the full 128-lane gates
        # vreg; sigmoid lanes use sigmoid(x) = 0.5 * (tanh(x/2) + 1).
        pre = jnp.where(g_mask, gates, 0.5 * gates)
        tg = jnp.tanh(pre)
        act = jnp.where(g_mask, tg, 0.5 * tg + 0.5)
        return (act[:, 0:H], act[:, H:2 * H],
                act[:, 2 * H:3 * H], act[:, 3 * H:4 * H])

    zeros = jnp.zeros((B, H), jnp.float32)
    h0 = c0 = h1 = c1 = zeros   # register-resident recurrent state

    for t in range(T):          # T=8, fully unrolled at trace time
        # layer-1 recurrent term from *old* h1 — independent of layer-0's step-t work,
        # so the scheduler can overlap this dot with the layer-0 chain below.
        g1_rec = jnp.dot(h1, whh1, preferred_element_type=jnp.float32) + b1
        # ----- layer 0 -----
        g0 = xw_ref[t] + jnp.dot(h0, whh0, preferred_element_type=jnp.float32)
        i0, f0, gg0, o0 = gate_act(g0)
        c0 = f0 * c0 + i0 * gg0
        h0 = o0 * jnp.tanh(c0)
        # ----- layer 1 (inter-layer dropout is identity in eval mode) -----
        g1 = g1_rec + jnp.dot(h0, wih1, preferred_element_type=jnp.float32)
        i1, f1, gg1, o1 = gate_act(g1)
        c1 = f1 * c1 + i1 * gg1
        h1 = o1 * jnp.tanh(c1)

    # final fully-connected layer on the last layer's final hidden state
    # (lane-dense 128-wide store; padding sliced off in the wrapper)
    out_ref[...] = (jnp.dot(h1, wfc_ref[...], preferred_element_type=jnp.float32)
                    + bfc_ref[...])


def init_params(key):
    """Deterministic parameter init matching PyTorch shapes (uniform(-1/sqrt(H), 1/sqrt(H)))."""
    k = 1.0 / jnp.sqrt(jnp.float32(HIDDEN))
    keys = jax.random.split(key, 10)
    u = lambda kk, shape: jax.random.uniform(kk, shape, jnp.float32, -k, k)
    return {
        "w_ih_l0": u(keys[0], (4 * HIDDEN, INPUT_DIM)),
        "w_hh_l0": u(keys[1], (4 * HIDDEN, HIDDEN)),
        "b_ih_l0": u(keys[2], (4 * HIDDEN,)),
        "b_hh_l0": u(keys[3], (4 * HIDDEN,)),
        "w_ih_l1": u(keys[4], (4 * HIDDEN, HIDDEN)),
        "w_hh_l1": u(keys[5], (4 * HIDDEN, HIDDEN)),
        "b_ih_l1": u(keys[6], (4 * HIDDEN,)),
        "b_hh_l1": u(keys[7], (4 * HIDDEN,)),
        "w_fc": u(keys[8], (OUT_FEATURES, HIDDEN)),
        "b_fc": u(keys[9], (OUT_FEATURES,)),
    }


@jax.jit
def seq_lstm_forward(x, params):
    """x: (B, T, INPUT_DIM) float32 -> (B, OUTPUT_LEN, OUTPUT_DIM)."""
    B, T, I = x.shape
    x_tbi = jnp.transpose(x, (1, 0, 2))  # time-major

    # Precompute layer-0 input contribution + bias for all timesteps: (T, B, 4H).
    b0 = (params["b_ih_l0"] + params["b_hh_l0"]).reshape(1, 1, -1)
    xw = jnp.einsum("tbi,gi->tbg", x_tbi, params["w_ih_l0"]) + b0

    whh0_t = params["w_hh_l0"].T                              # (H, 4H)
    wih1_t = params["w_ih_l1"].T                              # (H, 4H)
    whh1_t = params["w_hh_l1"].T                              # (H, 4H)
    b1 = (params["b_ih_l1"] + params["b_hh_l1"]).reshape(1, -1)   # (1, 4H)

    # FC weights / bias padded to 128 lanes for an unmasked lane-dense output store.
    wfc_pad = jnp.zeros((HIDDEN, OUT_PAD), jnp.float32).at[:, :OUT_FEATURES].set(
        params["w_fc"].T)
    bfc_pad = jnp.zeros((1, OUT_PAD), jnp.float32).at[:, :OUT_FEATURES].set(
        params["b_fc"])

    vmem = pl.BlockSpec(memory_space=pltpu.MemorySpace.VMEM)
    out_pad = pl.pallas_call(
        seq_lstm_kernel,
        out_shape=jax.ShapeDtypeStruct((B, OUT_PAD), jnp.float32),
        in_specs=[vmem] * 7,
        out_specs=vmem,
    )(xw, whh0_t, wih1_t, whh1_t, b1, wfc_pad, bfc_pad)

    return out_pad[:, :OUT_FEATURES].reshape(B, OUTPUT_LEN, OUTPUT_DIM)


def seq_lstm_reference(x, params):
    """Pure-JAX reference of the PyTorch forward (eval mode) for verification."""
    B, T, I = x.shape

    def cell(x_t, h, c, w_ih, w_hh, b_ih, b_hh):
        gates = x_t @ w_ih.T + h @ w_hh.T + b_ih + b_hh
        i, f, g, o = jnp.split(gates, 4, axis=-1)
        c = jax.nn.sigmoid(f) * c + jax.nn.sigmoid(i) * jnp.tanh(g)
        h = jax.nn.sigmoid(o) * jnp.tanh(c)
        return h, c

    h0 = c0 = h1 = c1 = jnp.zeros((B, HIDDEN), jnp.float32)
    for t in range(T):
        h0, c0 = cell(x[:, t, :], h0, c0,
                      params["w_ih_l0"], params["w_hh_l0"],
                      params["b_ih_l0"], params["b_hh_l0"])
        h1, c1 = cell(h0, h1, c1,
                      params["w_ih_l1"], params["w_hh_l1"],
                      params["b_ih_l1"], params["b_hh_l1"])
    out = h1 @ params["w_fc"].T + params["b_fc"]
    return out.reshape(B, OUTPUT_LEN, OUTPUT_DIM)


if __name__ == "__main__":
    key = jax.random.PRNGKey(0)
    k_params, k_x = jax.random.split(key)
    params = init_params(k_params)
    x = jax.random.normal(k_x, (BATCH, SEQ, INPUT_DIM), jnp.float32)

    out = seq_lstm_forward(x, params)
    out = jax.block_until_ready(out)

    ref = seq_lstm_reference(x, params)
    assert out.shape == (BATCH, OUTPUT_LEN, OUTPUT_DIM)
    # atol slightly relaxed vs exact-sigmoid: kernel uses sigmoid(x)=0.5*(tanh(x/2)+1).
    assert jnp.allclose(out, ref, atol=1e-4, rtol=1e-4), "mismatch vs reference"
    print("KERNEL_OK")
</pallas_src>

<mosaic_0001>
module attributes {stable_mosaic.version = 11 : i64} {
  func.func @seq_lstm_kernel(%arg0: memref<8x2x128xf32, #tpu.memory_space<vmem>>, %arg1: memref<32x128xf32, #tpu.memory_space<vmem>>, %arg2: memref<32x128xf32, #tpu.memory_space<vmem>>, %arg3: memref<32x128xf32, #tpu.memory_space<vmem>>, %arg4: memref<1x128xf32, #tpu.memory_space<vmem>>, %arg5: memref<32x128xf32, #tpu.memory_space<vmem>>, %arg6: memref<1x128xf32, #tpu.memory_space<vmem>>, %arg7: memref<2x128xf32, #tpu.memory_space<vmem>>) attributes {dimension_semantics = [], scalar_prefetch = 0 : i64, scratch_operands = 0 : i64, tpu.core_type = #tpu.core_type<tc>} {
    %c0 = arith.constant 0 : index
    %c0_0 = arith.constant 0 : index
    %0 = vector.load %arg1[%c0, %c0_0] : memref<32x128xf32, #tpu.memory_space<vmem>>, vector<32x128xf32>
    %c0_1 = arith.constant 0 : index
    %c0_2 = arith.constant 0 : index
    %1 = vector.load %arg2[%c0_1, %c0_2] : memref<32x128xf32, #tpu.memory_space<vmem>>, vector<32x128xf32>
    %c0_3 = arith.constant 0 : index
    %c0_4 = arith.constant 0 : index
    %2 = vector.load %arg3[%c0_3, %c0_4] : memref<32x128xf32, #tpu.memory_space<vmem>>, vector<32x128xf32>
    %c0_5 = arith.constant 0 : index
    %c0_6 = arith.constant 0 : index
    %3 = vector.load %arg4[%c0_5, %c0_6] : memref<1x128xf32, #tpu.memory_space<vmem>>, vector<1x128xf32>
    %4 = vector.shape_cast %3 : vector<1x128xf32> to vector<1x128xf32>
    %5 = vector.broadcast %4 : vector<1x128xf32> to vector<2x128xf32>
    %6 = tpu.iota {dimensions = array<i32: 1>} : vector<2x128xi32>
    %c64_i32 = arith.constant 64 : i32
    %7 = vector.broadcast %c64_i32 : i32 to vector<2x128xi32>
    %8 = arith.cmpi sge, %6, %7 : vector<2x128xi32>
    %c96_i32 = arith.constant 96 : i32
    %9 = vector.broadcast %c96_i32 : i32 to vector<2x128xi32>
    %10 = arith.cmpi slt, %6, %9 : vector<2x128xi32>
    %11 = arith.andi %8, %10 : vector<2x128xi1>
    %cst = arith.constant 0.000000e+00 : f32
    %12 = vector.broadcast %cst : f32 to vector<2x32xf32>
    %cst_7 = arith.constant dense<0.000000e+00> : vector<2x128xf32>
    %13 = tpu.matmul %12, %2, %cst_7 {dimension_numbers = #tpu.dot_dimension_numbers<[1], [0], [0], [1], [0, 0, 1, 1], [], []>} : vector<2x32xf32>, vector<32x128xf32>, vector<2x128xf32> -> vector<2x128xf32>
    %14 = arith.addf %13, %5 : vector<2x128xf32>
    %c0_8 = arith.constant 0 : index
    %c0_9 = arith.constant 0 : index
    %c0_10 = arith.constant 0 : index
    %15 = vector.load %arg0[%c0_8, %c0_9, %c0_10] : memref<8x2x128xf32, #tpu.memory_space<vmem>>, vector<1x2x128xf32>
    %16 = vector.shape_cast %15 : vector<1x2x128xf32> to vector<2x128xf32>
    %cst_11 = arith.constant dense<0.000000e+00> : vector<2x128xf32>
    %17 = tpu.matmul %12, %0, %cst_11 {dimension_numbers = #tpu.dot_dimension_numbers<[1], [0], [0], [1], [0, 0, 1, 1], [], []>} : vector<2x32xf32>, vector<32x128xf32>, vector<2x128xf32> -> vector<2x128xf32>
    %18 = arith.addf %16, %17 : vector<2x128xf32>
    %cst_12 = arith.constant 5.000000e-01 : f32
    %19 = vector.broadcast %cst_12 : f32 to vector<2x128xf32>
    %20 = arith.mulf %19, %18 : vector<2x128xf32>
    %21 = arith.select %11, %18, %20 : vector<2x128xi1>, vector<2x128xf32>
    %22 = math.tanh %21 : vector<2x128xf32>
    %cst_13 = arith.constant 5.000000e-01 : f32
    %23 = vector.broadcast %cst_13 : f32 to vector<2x128xf32>
    %24 = arith.mulf %23, %22 : vector<2x128xf32>
    %cst_14 = arith.constant 5.000000e-01 : f32
    %25 = vector.broadcast %cst_14 : f32 to vector<2x128xf32>
    %26 = arith.addf %24, %25 : vector<2x128xf32>
    %27 = arith.select %11, %22, %26 : vector<2x128xi1>, vector<2x128xf32>
    %28 = vector.extract_strided_slice %27 {offsets = [0, 0], sizes = [2, 32], strides = [1, 1]} : vector<2x128xf32> to vector<2x32xf32>
    %29 = vector.extract_strided_slice %27 {offsets = [0, 32], sizes = [2, 32], strides = [1, 1]} : vector<2x128xf32> to vector<2x32xf32>
    %30 = vector.extract_strided_slice %27 {offsets = [0, 64], sizes = [2, 32], strides = [1, 1]} : vector<2x128xf32> to vector<2x32xf32>
    %31 = vector.extract_strided_slice %27 {offsets = [0, 96], sizes = [2, 32], strides = [1, 1]} : vector<2x128xf32> to vector<2x32xf32>
    %32 = arith.mulf %29, %12 : vector<2x32xf32>
    %33 = arith.mulf %28, %30 : vector<2x32xf32>
    %34 = arith.addf %32, %33 : vector<2x32xf32>
    %35 = math.tanh %34 : vector<2x32xf32>
    %36 = arith.mulf %31, %35 : vector<2x32xf32>
    %cst_15 = arith.constant dense<0.000000e+00> : vector<2x128xf32>
    %37 = tpu.matmul %36, %1, %cst_15 {dimension_numbers = #tpu.dot_dimension_numbers<[1], [0], [0], [1], [0, 0, 1, 1], [], []>} : vector<2x32xf32>, vector<32x128xf32>, vector<2x128xf32> -> vector<2x128xf32>
    %38 = arith.addf %14, %37 : vector<2x128xf32>
    %cst_16 = arith.constant 5.000000e-01 : f32
    %39 = vector.broadcast %cst_16 : f32 to vector<2x128xf32>
    %40 = arith.mulf %39, %38 : vector<2x128xf32>
    %41 = arith.select %11, %38, %40 : vector<2x128xi1>, vector<2x128xf32>
    %42 = math.tanh %41 : vector<2x128xf32>
    %cst_17 = arith.constant 5.000000e-01 : f32
    %43 = vector.broadcast %cst_17 : f32 to vector<2x128xf32>
    %44 = arith.mulf %43, %42 : vector<2x128xf32>
    %cst_18 = arith.constant 5.000000e-01 : f32
    %45 = vector.broadcast %cst_18 : f32 to vector<2x128xf32>
    %46 = arith.addf %44, %45 : vector<2x128xf32>
    %47 = arith.select %11, %42, %46 : vector<2x128xi1>, vector<2x128xf32>
    %48 = vector.extract_strided_slice %47 {offsets = [0, 0], sizes = [2, 32], strides = [1, 1]} : vector<2x128xf32> to vector<2x32xf32>
    %49 = vector.extract_strided_slice %47 {offsets = [0, 32], sizes = [2, 32], strides = [1, 1]} : vector<2x128xf32> to vector<2x32xf32>
    %50 = vector.extract_strided_slice %47 {offsets = [0, 64], sizes = [2, 32], strides = [1, 1]} : vector<2x128xf32> to vector<2x32xf32>
    %51 = vector.extract_strided_slice %47 {offsets = [0, 96], sizes = [2, 32], strides = [1, 1]} : vector<2x128xf32> to vector<2x32xf32>
    %52 = arith.mulf %49, %12 : vector<2x32xf32>
    %53 = arith.mulf %48, %50 : vector<2x32xf32>
    %54 = arith.addf %52, %53 : vector<2x32xf32>
    %55 = math.tanh %54 : vector<2x32xf32>
    %56 = arith.mulf %51, %55 : vector<2x32xf32>
    %cst_19 = arith.constant dense<0.000000e+00> : vector<2x128xf32>
    %57 = tpu.matmul %56, %2, %cst_19 {dimension_numbers = #tpu.dot_dimension_numbers<[1], [0], [0], [1], [0, 0, 1, 1], [], []>} : vector<2x32xf32>, vector<32x128xf32>, vector<2x128xf32> -> vector<2x128xf32>
    %58 = arith.addf %57, %5 : vector<2x128xf32>
    %c1 = arith.constant 1 : index
    %c0_20 = arith.constant 0 : index
    %c0_21 = arith.constant 0 : index
    %59 = vector.load %arg0[%c1, %c0_20, %c0_21] : memref<8x2x128xf32, #tpu.memory_space<vmem>>, vector<1x2x128xf32>
    %60 = vector.shape_cast %59 : vector<1x2x128xf32> to vector<2x128xf32>
    %cst_22 = arith.constant dense<0.000000e+00> : vector<2x128xf32>
    %61 = tpu.matmul %36, %0, %cst_22 {dimension_numbers = #tpu.dot_dimension_numbers<[1], [0], [0], [1], [0, 0, 1, 1], [], []>} : vector<2x32xf32>, vector<32x128xf32>, vector<2x128xf32> -> vector<2x128xf32>
    %62 = arith.addf %60, %61 : vector<2x128xf32>
    %cst_23 = arith.constant 5.000000e-01 : f32
    %63 = vector.broadcast %cst_23 : f32 to vector<2x128xf32>
    %64 = arith.mulf %63, %62 : vector<2x128xf32>
    %65 = arith.select %11, %62, %64 : vector<2x128xi1>, vector<2x128xf32>
    %66 = math.tanh %65 : vector<2x128xf32>
    %cst_24 = arith.constant 5.000000e-01 : f32
    %67 = vector.broadcast %cst_24 : f32 to vector<2x128xf32>
    %68 = arith.mulf %67, %66 : vector<2x128xf32>
    %cst_25 = arith.constant 5.000000e-01 : f32
    %69 = vector.broadcast %cst_25 : f32 to vector<2x128xf32>
    %70 = arith.addf %68, %69 : vector<2x128xf32>
    %71 = arith.select %11, %66, %70 : vector<2x128xi1>, vector<2x128xf32>
    %72 = vector.extract_strided_slice %71 {offsets = [0, 0], sizes = [2, 32], strides = [1, 1]} : vector<2x128xf32> to vector<2x32xf32>
    %73 = vector.extract_strided_slice %71 {offsets = [0, 32], sizes = [2, 32], strides = [1, 1]} : vector<2x128xf32> to vector<2x32xf32>
    %74 = vector.extract_strided_slice %71 {offsets = [0, 64], sizes = [2, 32], strides = [1, 1]} : vector<2x128xf32> to vector<2x32xf32>
    %75 = vector.extract_strided_slice %71 {offsets = [0, 96], sizes = [2, 32], strides = [1, 1]} : vector<2x128xf32> to vector<2x32xf32>
    %76 = arith.mulf %73, %34 : vector<2x32xf32>
    %77 = arith.mulf %72, %74 : vector<2x32xf32>
    %78 = arith.addf %76, %77 : vector<2x32xf32>
    %79 = math.tanh %78 : vector<2x32xf32>
    %80 = arith.mulf %75, %79 : vector<2x32xf32>
    %cst_26 = arith.constant dense<0.000000e+00> : vector<2x128xf32>
    %81 = tpu.matmul %80, %1, %cst_26 {dimension_numbers = #tpu.dot_dimension_numbers<[1], [0], [0], [1], [0, 0, 1, 1], [], []>} : vector<2x32xf32>, vector<32x128xf32>, vector<2x128xf32> -> vector<2x128xf32>
    %82 = arith.addf %58, %81 : vector<2x128xf32>
    %cst_27 = arith.constant 5.000000e-01 : f32
    %83 = vector.broadcast %cst_27 : f32 to vector<2x128xf32>
    %84 = arith.mulf %83, %82 : vector<2x128xf32>
    %85 = arith.select %11, %82, %84 : vector<2x128xi1>, vector<2x128xf32>
    %86 = math.tanh %85 : vector<2x128xf32>
    %cst_28 = arith.constant 5.000000e-01 : f32
    %87 = vector.broadcast %cst_28 : f32 to vector<2x128xf32>
    %88 = arith.mulf %87, %86 : vector<2x128xf32>
    %cst_29 = arith.constant 5.000000e-01 : f32
    %89 = vector.broadcast %cst_29 : f32 to vector<2x128xf32>
    %90 = arith.addf %88, %89 : vector<2x128xf32>
    %91 = arith.select %11, %86, %90 : vector<2x128xi1>, vector<2x128xf32>
    %92 = vector.extract_strided_slice %91 {offsets = [0, 0], sizes = [2, 32], strides = [1, 1]} : vector<2x128xf32> to vector<2x32xf32>
    %93 = vector.extract_strided_slice %91 {offsets = [0, 32], sizes = [2, 32], strides = [1, 1]} : vector<2x128xf32> to vector<2x32xf32>
    %94 = vector.extract_strided_slice %91 {offsets = [0, 64], sizes = [2, 32], strides = [1, 1]} : vector<2x128xf32> to vector<2x32xf32>
    %95 = vector.extract_strided_slice %91 {offsets = [0, 96], sizes = [2, 32], strides = [1, 1]} : vector<2x128xf32> to vector<2x32xf32>
    %96 = arith.mulf %93, %54 : vector<2x32xf32>
    %97 = arith.mulf %92, %94 : vector<2x32xf32>
    %98 = arith.addf %96, %97 : vector<2x32xf32>
    %99 = math.tanh %98 : vector<2x32xf32>
    %100 = arith.mulf %95, %99 : vector<2x32xf32>
    %cst_30 = arith.constant dense<0.000000e+00> : vector<2x128xf32>
    %101 = tpu.matmul %100, %2, %cst_30 {dimension_numbers = #tpu.dot_dimension_numbers<[1], [0], [0], [1], [0, 0, 1, 1], [], []>} : vector<2x32xf32>, vector<32x128xf32>, vector<2x128xf32> -> vector<2x128xf32>
    %102 = arith.addf %101, %5 : vector<2x128xf32>
    %c2 = arith.constant 2 : index
    %c0_31 = arith.constant 0 : index
    %c0_32 = arith.constant 0 : index
    %103 = vector.load %arg0[%c2, %c0_31, %c0_32] : memref<8x2x128xf32, #tpu.memory_space<vmem>>, vector<1x2x128xf32>
    %104 = vector.shape_cast %103 : vector<1x2x128xf32> to vector<2x128xf32>
    %cst_33 = arith.constant dense<0.000000e+00> : vector<2x128xf32>
    %105 = tpu.matmul %80, %0, %cst_33 {dimension_numbers = #tpu.dot_dimension_numbers<[1], [0], [0], [1], [0, 0, 1, 1], [], []>} : vector<2x32xf32>, vector<32x128xf32>, vector<2x128xf32> -> vector<2x128xf32>
    %106 = arith.addf %104, %105 : vector<2x128xf32>
    %cst_34 = arith.constant 5.000000e-01 : f32
    %107 = vector.broadcast %cst_34 : f32 to vector<2x128xf32>
    %108 = arith.mulf %107, %106 : vector<2x128xf32>
    %109 = arith.select %11, %106, %108 : vector<2x128xi1>, vector<2x128xf32>
    %110 = math.tanh %109 : vector<2x128xf32>
    %cst_35 = arith.constant 5.000000e-01 : f32
    %111 = vector.broadcast %cst_35 : f32 to vector<2x128xf32>
    %112 = arith.mulf %111, %110 : vector<2x128xf32>
    %cst_36 = arith.constant 5.000000e-01 : f32
    %113 = vector.broadcast %cst_36 : f32 to vector<2x128xf32>
    %114 = arith.addf %112, %113 : vector<2x128xf32>
    %115 = arith.select %11, %110, %114 : vector<2x128xi1>, vector<2x128xf32>
    %116 = vector.extract_strided_slice %115 {offsets = [0, 0], sizes = [2, 32], strides = [1, 1]} : vector<2x128xf32> to vector<2x32xf32>
    %117 = vector.extract_strided_slice %115 {offsets = [0, 32], sizes = [2, 32], strides = [1, 1]} : vector<2x128xf32> to vector<2x32xf32>
    %118 = vector.extract_strided_slice %115 {offsets = [0, 64], sizes = [2, 32], strides = [1, 1]} : vector<2x128xf32> to vector<2x32xf32>
    %119 = vector.extract_strided_slice %115 {offsets = [0, 96], sizes = [2, 32], strides = [1, 1]} : vector<2x128xf32> to vector<2x32xf32>
    %120 = arith.mulf %117, %78 : vector<2x32xf32>
    %121 = arith.mulf %116, %118 : vector<2x32xf32>
    %122 = arith.addf %120, %121 : vector<2x32xf32>
    %123 = math.tanh %122 : vector<2x32xf32>
    %124 = arith.mulf %119, %123 : vector<2x32xf32>
    %cst_37 = arith.constant dense<0.000000e+00> : vector<2x128xf32>
    %125 = tpu.matmul %124, %1, %cst_37 {dimension_numbers = #tpu.dot_dimension_numbers<[1], [0], [0], [1], [0, 0, 1, 1], [], []>} : vector<2x32xf32>, vector<32x128xf32>, vector<2x128xf32> -> vector<2x128xf32>
    %126 = arith.addf %102, %125 : vector<2x128xf32>
    %cst_38 = arith.constant 5.000000e-01 : f32
    %127 = vector.broadcast %cst_38 : f32 to vector<2x128xf32>
    %128 = arith.mulf %127, %126 : vector<2x128xf32>
    %129 = arith.select %11, %126, %128 : vector<2x128xi1>, vector<2x128xf32>
    %130 = math.tanh %129 : vector<2x128xf32>
    %cst_39 = arith.constant 5.000000e-01 : f32
    %131 = vector.broadcast %cst_39 : f32 to vector<2x128xf32>
    %132 = arith.mulf %131, %130 : vector<2x128xf32>
    %cst_40 = arith.constant 5.000000e-01 : f32
    %133 = vector.broadcast %cst_40 : f32 to vector<2x128xf32>
    %134 = arith.addf %132, %133 : vector<2x128xf32>
    %135 = arith.select %11, %130, %134 : vector<2x128xi1>, vector<2x128xf32>
    %136 = vector.extract_strided_slice %135 {offsets = [0, 0], sizes = [2, 32], strides = [1, 1]} : vector<2x128xf32> to vector<2x32xf32>
    %137 = vector.extract_strided_slice %135 {offsets = [0, 32], sizes = [2, 32], strides = [1, 1]} : vector<2x128xf32> to vector<2x32xf32>
    %138 = vector.extract_strided_slice %135 {offsets = [0, 64], sizes = [2, 32], strides = [1, 1]} : vector<2x128xf32> to vector<2x32xf32>
    %139 = vector.extract_strided_slice %135 {offsets = [0, 96], sizes = [2, 32], strides = [1, 1]} : vector<2x128xf32> to vector<2x32xf32>
    %140 = arith.mulf %137, %98 : vector<2x32xf32>
    %141 = arith.mulf %136, %138 : vector<2x32xf32>
    %142 = arith.addf %140, %141 : vector<2x32xf32>
    %143 = math.tanh %142 : vector<2x32xf32>
    %144 = arith.mulf %139, %143 : vector<2x32xf32>
    %cst_41 = arith.constant dense<0.000000e+00> : vector<2x128xf32>
    %145 = tpu.matmul %144, %2, %cst_41 {dimension_numbers = #tpu.dot_dimension_numbers<[1], [0], [0], [1], [0, 0, 1, 1], [], []>} : vector<2x32xf32>, vector<32x128xf32>, vector<2x128xf32> -> vector<2x128xf32>
    %146 = arith.addf %145, %5 : vector<2x128xf32>
    %c3 = arith.constant 3 : index
    %c0_42 = arith.constant 0 : index
    %c0_43 = arith.constant 0 : index
    %147 = vector.load %arg0[%c3, %c0_42, %c0_43] : memref<8x2x128xf32, #tpu.memory_space<vmem>>, vector<1x2x128xf32>
    %148 = vector.shape_cast %147 : vector<1x2x128xf32> to vector<2x128xf32>
    %cst_44 = arith.constant dense<0.000000e+00> : vector<2x128xf32>
    %149 = tpu.matmul %124, %0, %cst_44 {dimension_numbers = #tpu.dot_dimension_numbers<[1], [0], [0], [1], [0, 0, 1, 1], [], []>} : vector<2x32xf32>, vector<32x128xf32>, vector<2x128xf32> -> vector<2x128xf32>
    %150 = arith.addf %148, %149 : vector<2x128xf32>
    %cst_45 = arith.constant 5.000000e-01 : f32
    %151 = vector.broadcast %cst_45 : f32 to vector<2x128xf32>
    %152 = arith.mulf %151, %150 : vector<2x128xf32>
    %153 = arith.select %11, %150, %152 : vector<2x128xi1>, vector<2x128xf32>
    %154 = math.tanh %153 : vector<2x128xf32>
    %cst_46 = arith.constant 5.000000e-01 : f32
    %155 = vector.broadcast %cst_46 : f32 to vector<2x128xf32>
    %156 = arith.mulf %155, %154 : vector<2x128xf32>
    %cst_47 = arith.constant 5.000000e-01 : f32
    %157 = vector.broadcast %cst_47 : f32 to vector<2x128xf32>
    %158 = arith.addf %156, %157 : vector<2x128xf32>
    %159 = arith.select %11, %154, %158 : vector<2x128xi1>, vector<2x128xf32>
    %160 = vector.extract_strided_slice %159 {offsets = [0, 0], sizes = [2, 32], strides = [1, 1]} : vector<2x128xf32> to vector<2x32xf32>
    %161 = vector.extract_strided_slice %159 {offsets = [0, 32], sizes = [2, 32], strides = [1, 1]} : vector<2x128xf32> to vector<2x32xf32>
    %162 = vector.extract_strided_slice %159 {offsets = [0, 64], sizes = [2, 32], strides = [1, 1]} : vector<2x128xf32> to vector<2x32xf32>
    %163 = vector.extract_strided_slice %159 {offsets = [0, 96], sizes = [2, 32], strides = [1, 1]} : vector<2x128xf32> to vector<2x32xf32>
    %164 = arith.mulf %161, %122 : vector<2x32xf32>
    %165 = arith.mulf %160, %162 : vector<2x32xf32>
    %166 = arith.addf %164, %165 : vector<2x32xf32>
    %167 = math.tanh %166 : vector<2x32xf32>
    %168 = arith.mulf %163, %167 : vector<2x32xf32>
    %cst_48 = arith.constant dense<0.000000e+00> : vector<2x128xf32>
    %169 = tpu.matmul %168, %1, %cst_48 {dimension_numbers = #tpu.dot_dimension_numbers<[1], [0], [0], [1], [0, 0, 1, 1], [], []>} : vector<2x32xf32>, vector<32x128xf32>, vector<2x128xf32> -> vector<2x128xf32>
    %170 = arith.addf %146, %169 : vector<2x128xf32>
    %cst_49 = arith.constant 5.000000e-01 : f32
    %171 = vector.broadcast %cst_49 : f32 to vector<2x128xf32>
    %172 = arith.mulf %171, %170 : vector<2x128xf32>
    %173 = arith.select %11, %170, %172 : vector<2x128xi1>, vector<2x128xf32>
    %174 = math.tanh %173 : vector<2x128xf32>
    %cst_50 = arith.constant 5.000000e-01 : f32
    %175 = vector.broadcast %cst_50 : f32 to vector<2x128xf32>
    %176 = arith.mulf %175, %174 : vector<2x128xf32>
    %cst_51 = arith.constant 5.000000e-01 : f32
    %177 = vector.broadcast %cst_51 : f32 to vector<2x128xf32>
    %178 = arith.addf %176, %177 : vector<2x128xf32>
    %179 = arith.select %11, %174, %178 : vector<2x128xi1>, vector<2x128xf32>
    %180 = vector.extract_strided_slice %179 {offsets = [0, 0], sizes = [2, 32], strides = [1, 1]} : vector<2x128xf32> to vector<2x32xf32>
    %181 = vector.extract_strided_slice %179 {offsets = [0, 32], sizes = [2, 32], strides = [1, 1]} : vector<2x128xf32> to vector<2x32xf32>
    %182 = vector.extract_strided_slice %179 {offsets = [0, 64], sizes = [2, 32], strides = [1, 1]} : vector<2x128xf32> to vector<2x32xf32>
    %183 = vector.extract_strided_slice %179 {offsets = [0, 96], sizes = [2, 32], strides = [1, 1]} : vector<2x128xf32> to vector<2x32xf32>
    %184 = arith.mulf %181, %142 : vector<2x32xf32>
    %185 = arith.mulf %180, %182 : vector<2x32xf32>
    %186 = arith.addf %184, %185 : vector<2x32xf32>
    %187 = math.tanh %186 : vector<2x32xf32>
    %188 = arith.mulf %183, %187 : vector<2x32xf32>
    %cst_52 = arith.constant dense<0.000000e+00> : vector<2x128xf32>
    %189 = tpu.matmul %188, %2, %cst_52 {dimension_numbers = #tpu.dot_dimension_numbers<[1], [0], [0], [1], [0, 0, 1, 1], [], []>} : vector<2x32xf32>, vector<32x128xf32>, vector<2x128xf32> -> vector<2x128xf32>
    %190 = arith.addf %189, %5 : vector<2x128xf32>
    %c4 = arith.constant 4 : index
    %c0_53 = arith.constant 0 : index
    %c0_54 = arith.constant 0 : index
    %191 = vector.load %arg0[%c4, %c0_53, %c0_54] : memref<8x2x128xf32, #tpu.memory_space<vmem>>, vector<1x2x128xf32>
    %192 = vector.shape_cast %191 : vector<1x2x128xf32> to vector<2x128xf32>
    %cst_55 = arith.constant dense<0.000000e+00> : vector<2x128xf32>
    %193 = tpu.matmul %168, %0, %cst_55 {dimension_numbers = #tpu.dot_dimension_numbers<[1], [0], [0], [1], [0, 0, 1, 1], [], []>} : vector<2x32xf32>, vector<32x128xf32>, vector<2x128xf32> -> vector<2x128xf32>
    %194 = arith.addf %192, %193 : vector<2x128xf32>
    %cst_56 = arith.constant 5.000000e-01 : f32
    %195 = vector.broadcast %cst_56 : f32 to vector<2x128xf32>
    %196 = arith.mulf %195, %194 : vector<2x128xf32>
    %197 = arith.select %11, %194, %196 : vector<2x128xi1>, vector<2x128xf32>
    %198 = math.tanh %197 : vector<2x128xf32>
    %cst_57 = arith.constant 5.000000e-01 : f32
    %199 = vector.broadcast %cst_57 : f32 to vector<2x128xf32>
    %200 = arith.mulf %199, %198 : vector<2x128xf32>
    %cst_58 = arith.constant 5.000000e-01 : f32
    %201 = vector.broadcast %cst_58 : f32 to vector<2x128xf32>
    %202 = arith.addf %200, %201 : vector<2x128xf32>
    %203 = arith.select %11, %198, %202 : vector<2x128xi1>, vector<2x128xf32>
    %204 = vector.extract_strided_slice %203 {offsets = [0, 0], sizes = [2, 32], strides = [1, 1]} : vector<2x128xf32> to vector<2x32xf32>
    %205 = vector.extract_strided_slice %203 {offsets = [0, 32], sizes = [2, 32], strides = [1, 1]} : vector<2x128xf32> to vector<2x32xf32>
    %206 = vector.extract_strided_slice %203 {offsets = [0, 64], sizes = [2, 32], strides = [1, 1]} : vector<2x128xf32> to vector<2x32xf32>
    %207 = vector.extract_strided_slice %203 {offsets = [0, 96], sizes = [2, 32], strides = [1, 1]} : vector<2x128xf32> to vector<2x32xf32>
    %208 = arith.mulf %205, %166 : vector<2x32xf32>
    %209 = arith.mulf %204, %206 : vector<2x32xf32>
    %210 = arith.addf %208, %209 : vector<2x32xf32>
    %211 = math.tanh %210 : vector<2x32xf32>
    %212 = arith.mulf %207, %211 : vector<2x32xf32>
    %cst_59 = arith.constant dense<0.000000e+00> : vector<2x128xf32>
    %213 = tpu.matmul %212, %1, %cst_59 {dimension_numbers = #tpu.dot_dimension_numbers<[1], [0], [0], [1], [0, 0, 1, 1], [], []>} : vector<2x32xf32>, vector<32x128xf32>, vector<2x128xf32> -> vector<2x128xf32>
    %214 = arith.addf %190, %213 : vector<2x128xf32>
    %cst_60 = arith.constant 5.000000e-01 : f32
    %215 = vector.broadcast %cst_60 : f32 to vector<2x128xf32>
    %216 = arith.mulf %215, %214 : vector<2x128xf32>
    %217 = arith.select %11, %214, %216 : vector<2x128xi1>, vector<2x128xf32>
    %218 = math.tanh %217 : vector<2x128xf32>
    %cst_61 = arith.constant 5.000000e-01 : f32
    %219 = vector.broadcast %cst_61 : f32 to vector<2x128xf32>
    %220 = arith.mulf %219, %218 : vector<2x128xf32>
    %cst_62 = arith.constant 5.000000e-01 : f32
    %221 = vector.broadcast %cst_62 : f32 to vector<2x128xf32>
    %222 = arith.addf %220, %221 : vector<2x128xf32>
    %223 = arith.select %11, %218, %222 : vector<2x128xi1>, vector<2x128xf32>
    %224 = vector.extract_strided_slice %223 {offsets = [0, 0], sizes = [2, 32], strides = [1, 1]} : vector<2x128xf32> to vector<2x32xf32>
    %225 = vector.extract_strided_slice %223 {offsets = [0, 32], sizes = [2, 32], strides = [1, 1]} : vector<2x128xf32> to vector<2x32xf32>
    %226 = vector.extract_strided_slice %223 {offsets = [0, 64], sizes = [2, 32], strides = [1, 1]} : vector<2x128xf32> to vector<2x32xf32>
    %227 = vector.extract_strided_slice %223 {offsets = [0, 96], sizes = [2, 32], strides = [1, 1]} : vector<2x128xf32> to vector<2x32xf32>
    %228 = arith.mulf %225, %186 : vector<2x32xf32>
    %229 = arith.mulf %224, %226 : vector<2x32xf32>
    %230 = arith.addf %228, %229 : vector<2x32xf32>
    %231 = math.tanh %230 : vector<2x32xf32>
    %232 = arith.mulf %227, %231 : vector<2x32xf32>
    %cst_63 = arith.constant dense<0.000000e+00> : vector<2x128xf32>
    %233 = tpu.matmul %232, %2, %cst_63 {dimension_numbers = #tpu.dot_dimension_numbers<[1], [0], [0], [1], [0, 0, 1, 1], [], []>} : vector<2x32xf32>, vector<32x128xf32>, vector<2x128xf32> -> vector<2x128xf32>
    %234 = arith.addf %233, %5 : vector<2x128xf32>
    %c5 = arith.constant 5 : index
    %c0_64 = arith.constant 0 : index
    %c0_65 = arith.constant 0 : index
    %235 = vector.load %arg0[%c5, %c0_64, %c0_65] : memref<8x2x128xf32, #tpu.memory_space<vmem>>, vector<1x2x128xf32>
    %236 = vector.shape_cast %235 : vector<1x2x128xf32> to vector<2x128xf32>
    %cst_66 = arith.constant dense<0.000000e+00> : vector<2x128xf32>
    %237 = tpu.matmul %212, %0, %cst_66 {dimension_numbers = #tpu.dot_dimension_numbers<[1], [0], [0], [1], [0, 0, 1, 1], [], []>} : vector<2x32xf32>, vector<32x128xf32>, vector<2x128xf32> -> vector<2x128xf32>
    %238 = arith.addf %236, %237 : vector<2x128xf32>
    %cst_67 = arith.constant 5.000000e-01 : f32
    %239 = vector.broadcast %cst_67 : f32 to vector<2x128xf32>
    %240 = arith.mulf %239, %238 : vector<2x128xf32>
    %241 = arith.select %11, %238, %240 : vector<2x128xi1>, vector<2x128xf32>
    %242 = math.tanh %241 : vector<2x128xf32>
    %cst_68 = arith.constant 5.000000e-01 : f32
    %243 = vector.broadcast %cst_68 : f32 to vector<2x128xf32>
    %244 = arith.mulf %243, %242 : vector<2x128xf32>
    %cst_69 = arith.constant 5.000000e-01 : f32
    %245 = vector.broadcast %cst_69 : f32 to vector<2x128xf32>
    %246 = arith.addf %244, %245 : vector<2x128xf32>
    %247 = arith.select %11, %242, %246 : vector<2x128xi1>, vector<2x128xf32>
    %248 = vector.extract_strided_slice %247 {offsets = [0, 0], sizes = [2, 32], strides = [1, 1]} : vector<2x128xf32> to vector<2x32xf32>
    %249 = vector.extract_strided_slice %247 {offsets = [0, 32], sizes = [2, 32], strides = [1, 1]} : vector<2x128xf32> to vector<2x32xf32>
    %250 = vector.extract_strided_slice %247 {offsets = [0, 64], sizes = [2, 32], strides = [1, 1]} : vector<2x128xf32> to vector<2x32xf32>
    %251 = vector.extract_strided_slice %247 {offsets = [0, 96], sizes = [2, 32], strides = [1, 1]} : vector<2x128xf32> to vector<2x32xf32>
    %252 = arith.mulf %249, %210 : vector<2x32xf32>
    %253 = arith.mulf %248, %250 : vector<2x32xf32>
    %254 = arith.addf %252, %253 : vector<2x32xf32>
    %255 = math.tanh %254 : vector<2x32xf32>
    %256 = arith.mulf %251, %255 : vector<2x32xf32>
    %cst_70 = arith.constant dense<0.000000e+00> : vector<2x128xf32>
    %257 = tpu.matmul %256, %1, %cst_70 {dimension_numbers = #tpu.dot_dimension_numbers<[1], [0], [0], [1], [0, 0, 1, 1], [], []>} : vector<2x32xf32>, vector<32x128xf32>, vector<2x128xf32> -> vector<2x128xf32>
    %258 = arith.addf %234, %257 : vector<2x128xf32>
    %cst_71 = arith.constant 5.000000e-01 : f32
    %259 = vector.broadcast %cst_71 : f32 to vector<2x128xf32>
    %260 = arith.mulf %259, %258 : vector<2x128xf32>
    %261 = arith.select %11, %258, %260 : vector<2x128xi1>, vector<2x128xf32>
    %262 = math.tanh %261 : vector<2x128xf32>
    %cst_72 = arith.constant 5.000000e-01 : f32
    %263 = vector.broadcast %cst_72 : f32 to vector<2x128xf32>
    %264 = arith.mulf %263, %262 : vector<2x128xf32>
    %cst_73 = arith.constant 5.000000e-01 : f32
    %265 = vector.broadcast %cst_73 : f32 to vector<2x128xf32>
    %266 = arith.addf %264, %265 : vector<2x128xf32>
    %267 = arith.select %11, %262, %266 : vector<2x128xi1>, vector<2x128xf32>
    %268 = vector.extract_strided_slice %267 {offsets = [0, 0], sizes = [2, 32], strides = [1, 1]} : vector<2x128xf32> to vector<2x32xf32>
    %269 = vector.extract_strided_slice %267 {offsets = [0, 32], sizes = [2, 32], strides = [1, 1]} : vector<2x128xf32> to vector<2x32xf32>
    %270 = vector.extract_strided_slice %267 {offsets = [0, 64], sizes = [2, 32], strides = [1, 1]} : vector<2x128xf32> to vector<2x32xf32>
    %271 = vector.extract_strided_slice %267 {offsets = [0, 96], sizes = [2, 32], strides = [1, 1]} : vector<2x128xf32> to vector<2x32xf32>
    %272 = arith.mulf %269, %230 : vector<2x32xf32>
    %273 = arith.mulf %268, %270 : vector<2x32xf32>
    %274 = arith.addf %272, %273 : vector<2x32xf32>
    %275 = math.tanh %274 : vector<2x32xf32>
    %276 = arith.mulf %271, %275 : vector<2x32xf32>
    %cst_74 = arith.constant dense<0.000000e+00> : vector<2x128xf32>
    %277 = tpu.matmul %276, %2, %cst_74 {dimension_numbers = #tpu.dot_dimension_numbers<[1], [0], [0], [1], [0, 0, 1, 1], [], []>} : vector<2x32xf32>, vector<32x128xf32>, vector<2x128xf32> -> vector<2x128xf32>
    %278 = arith.addf %277, %5 : vector<2x128xf32>
    %c6 = arith.constant 6 : index
    %c0_75 = arith.constant 0 : index
    %c0_76 = arith.constant 0 : index
    %279 = vector.load %arg0[%c6, %c0_75, %c0_76] : memref<8x2x128xf32, #tpu.memory_space<vmem>>, vector<1x2x128xf32>
    %280 = vector.shape_cast %279 : vector<1x2x128xf32> to vector<2x128xf32>
    %cst_77 = arith.constant dense<0.000000e+00> : vector<2x128xf32>
    %281 = tpu.matmul %256, %0, %cst_77 {dimension_numbers = #tpu.dot_dimension_numbers<[1], [0], [0], [1], [0, 0, 1, 1], [], []>} : vector<2x32xf32>, vector<32x128xf32>, vector<2x128xf32> -> vector<2x128xf32>
    %282 = arith.addf %280, %281 : vector<2x128xf32>
    %cst_78 = arith.constant 5.000000e-01 : f32
    %283 = vector.broadcast %cst_78 : f32 to vector<2x128xf32>
    %284 = arith.mulf %283, %282 : vector<2x128xf32>
    %285 = arith.select %11, %282, %284 : vector<2x128xi1>, vector<2x128xf32>
    %286 = math.tanh %285 : vector<2x128xf32>
    %cst_79 = arith.constant 5.000000e-01 : f32
    %287 = vector.broadcast %cst_79 : f32 to vector<2x128xf32>
    %288 = arith.mulf %287, %286 : vector<2x128xf32>
    %cst_80 = arith.constant 5.000000e-01 : f32
    %289 = vector.broadcast %cst_80 : f32 to vector<2x128xf32>
    %290 = arith.addf %288, %289 : vector<2x128xf32>
    %291 = arith.select %11, %286, %290 : vector<2x128xi1>, vector<2x128xf32>
    %292 = vector.extract_strided_slice %291 {offsets = [0, 0], sizes = [2, 32], strides = [1, 1]} : vector<2x128xf32> to vector<2x32xf32>
    %293 = vector.extract_strided_slice %291 {offsets = [0, 32], sizes = [2, 32], strides = [1, 1]} : vector<2x128xf32> to vector<2x32xf32>
    %294 = vector.extract_strided_slice %291 {offsets = [0, 64], sizes = [2, 32], strides = [1, 1]} : vector<2x128xf32> to vector<2x32xf32>
    %295 = vector.extract_strided_slice %291 {offsets = [0, 96], sizes = [2, 32], strides = [1, 1]} : vector<2x128xf32> to vector<2x32xf32>
    %296 = arith.mulf %293, %254 : vector<2x32xf32>
    %297 = arith.mulf %292, %294 : vector<2x32xf32>
    %298 = arith.addf %296, %297 : vector<2x32xf32>
    %299 = math.tanh %298 : vector<2x32xf32>
    %300 = arith.mulf %295, %299 : vector<2x32xf32>
    %cst_81 = arith.constant dense<0.000000e+00> : vector<2x128xf32>
    %301 = tpu.matmul %300, %1, %cst_81 {dimension_numbers = #tpu.dot_dimension_numbers<[1], [0], [0], [1], [0, 0, 1, 1], [], []>} : vector<2x32xf32>, vector<32x128xf32>, vector<2x128xf32> -> vector<2x128xf32>
    %302 = arith.addf %278, %301 : vector<2x128xf32>
    %cst_82 = arith.constant 5.000000e-01 : f32
    %303 = vector.broadcast %cst_82 : f32 to vector<2x128xf32>
    %304 = arith.mulf %303, %302 : vector<2x128xf32>
    %305 = arith.select %11, %302, %304 : vector<2x128xi1>, vector<2x128xf32>
    %306 = math.tanh %305 : vector<2x128xf32>
    %cst_83 = arith.constant 5.000000e-01 : f32
    %307 = vector.broadcast %cst_83 : f32 to vector<2x128xf32>
    %308 = arith.mulf %307, %306 : vector<2x128xf32>
    %cst_84 = arith.constant 5.000000e-01 : f32
    %309 = vector.broadcast %cst_84 : f32 to vector<2x128xf32>
    %310 = arith.addf %308, %309 : vector<2x128xf32>
    %311 = arith.select %11, %306, %310 : vector<2x128xi1>, vector<2x128xf32>
    %312 = vector.extract_strided_slice %311 {offsets = [0, 0], sizes = [2, 32], strides = [1, 1]} : vector<2x128xf32> to vector<2x32xf32>
    %313 = vector.extract_strided_slice %311 {offsets = [0, 32], sizes = [2, 32], strides = [1, 1]} : vector<2x128xf32> to vector<2x32xf32>
    %314 = vector.extract_strided_slice %311 {offsets = [0, 64], sizes = [2, 32], strides = [1, 1]} : vector<2x128xf32> to vector<2x32xf32>
    %315 = vector.extract_strided_slice %311 {offsets = [0, 96], sizes = [2, 32], strides = [1, 1]} : vector<2x128xf32> to vector<2x32xf32>
    %316 = arith.mulf %313, %274 : vector<2x32xf32>
    %317 = arith.mulf %312, %314 : vector<2x32xf32>
    %318 = arith.addf %316, %317 : vector<2x32xf32>
    %319 = math.tanh %318 : vector<2x32xf32>
    %320 = arith.mulf %315, %319 : vector<2x32xf32>
    %cst_85 = arith.constant dense<0.000000e+00> : vector<2x128xf32>
    %321 = tpu.matmul %320, %2, %cst_85 {dimension_numbers = #tpu.dot_dimension_numbers<[1], [0], [0], [1], [0, 0, 1, 1], [], []>} : vector<2x32xf32>, vector<32x128xf32>, vector<2x128xf32> -> vector<2x128xf32>
    %322 = arith.addf %321, %5 : vector<2x128xf32>
    %c7 = arith.constant 7 : index
    %c0_86 = arith.constant 0 : index
    %c0_87 = arith.constant 0 : index
    %323 = vector.load %arg0[%c7, %c0_86, %c0_87] : memref<8x2x128xf32, #tpu.memory_space<vmem>>, vector<1x2x128xf32>
    %324 = vector.shape_cast %323 : vector<1x2x128xf32> to vector<2x128xf32>
    %cst_88 = arith.constant dense<0.000000e+00> : vector<2x128xf32>
    %325 = tpu.matmul %300, %0, %cst_88 {dimension_numbers = #tpu.dot_dimension_numbers<[1], [0], [0], [1], [0, 0, 1, 1], [], []>} : vector<2x32xf32>, vector<32x128xf32>, vector<2x128xf32> -> vector<2x128xf32>
    %326 = arith.addf %324, %325 : vector<2x128xf32>
    %cst_89 = arith.constant 5.000000e-01 : f32
    %327 = vector.broadcast %cst_89 : f32 to vector<2x128xf32>
    %328 = arith.mulf %327, %326 : vector<2x128xf32>
    %329 = arith.select %11, %326, %328 : vector<2x128xi1>, vector<2x128xf32>
    %330 = math.tanh %329 : vector<2x128xf32>
    %cst_90 = arith.constant 5.000000e-01 : f32
    %331 = vector.broadcast %cst_90 : f32 to vector<2x128xf32>
    %332 = arith.mulf %331, %330 : vector<2x128xf32>
    %cst_91 = arith.constant 5.000000e-01 : f32
    %333 = vector.broadcast %cst_91 : f32 to vector<2x128xf32>
    %334 = arith.addf %332, %333 : vector<2x128xf32>
    %335 = arith.select %11, %330, %334 : vector<2x128xi1>, vector<2x128xf32>
    %336 = vector.extract_strided_slice %335 {offsets = [0, 0], sizes = [2, 32], strides = [1, 1]} : vector<2x128xf32> to vector<2x32xf32>
    %337 = vector.extract_strided_slice %335 {offsets = [0, 32], sizes = [2, 32], strides = [1, 1]} : vector<2x128xf32> to vector<2x32xf32>
    %338 = vector.extract_strided_slice %335 {offsets = [0, 64], sizes = [2, 32], strides = [1, 1]} : vector<2x128xf32> to vector<2x32xf32>
    %339 = vector.extract_strided_slice %335 {offsets = [0, 96], sizes = [2, 32], strides = [1, 1]} : vector<2x128xf32> to vector<2x32xf32>
    %340 = arith.mulf %337, %298 : vector<2x32xf32>
    %341 = arith.mulf %336, %338 : vector<2x32xf32>
    %342 = arith.addf %340, %341 : vector<2x32xf32>
    %343 = math.tanh %342 : vector<2x32xf32>
    %344 = arith.mulf %339, %343 : vector<2x32xf32>
    %cst_92 = arith.constant dense<0.000000e+00> : vector<2x128xf32>
    %345 = tpu.matmul %344, %1, %cst_92 {dimension_numbers = #tpu.dot_dimension_numbers<[1], [0], [0], [1], [0, 0, 1, 1], [], []>} : vector<2x32xf32>, vector<32x128xf32>, vector<2x128xf32> -> vector<2x128xf32>
    %346 = arith.addf %322, %345 : vector<2x128xf32>
    %cst_93 = arith.constant 5.000000e-01 : f32
    %347 = vector.broadcast %cst_93 : f32 to vector<2x128xf32>
    %348 = arith.mulf %347, %346 : vector<2x128xf32>
    %349 = arith.select %11, %346, %348 : vector<2x128xi1>, vector<2x128xf32>
    %350 = math.tanh %349 : vector<2x128xf32>
    %cst_94 = arith.constant 5.000000e-01 : f32
    %351 = vector.broadcast %cst_94 : f32 to vector<2x128xf32>
    %352 = arith.mulf %351, %350 : vector<2x128xf32>
    %cst_95 = arith.constant 5.000000e-01 : f32
    %353 = vector.broadcast %cst_95 : f32 to vector<2x128xf32>
    %354 = arith.addf %352, %353 : vector<2x128xf32>
    %355 = arith.select %11, %350, %354 : vector<2x128xi1>, vector<2x128xf32>
    %356 = vector.extract_strided_slice %355 {offsets = [0, 0], sizes = [2, 32], strides = [1, 1]} : vector<2x128xf32> to vector<2x32xf32>
    %357 = vector.extract_strided_slice %355 {offsets = [0, 32], sizes = [2, 32], strides = [1, 1]} : vector<2x128xf32> to vector<2x32xf32>
    %358 = vector.extract_strided_slice %355 {offsets = [0, 64], sizes = [2, 32], strides = [1, 1]} : vector<2x128xf32> to vector<2x32xf32>
    %359 = vector.extract_strided_slice %355 {offsets = [0, 96], sizes = [2, 32], strides = [1, 1]} : vector<2x128xf32> to vector<2x32xf32>
    %360 = arith.mulf %357, %318 : vector<2x32xf32>
    %361 = arith.mulf %356, %358 : vector<2x32xf32>
    %362 = arith.addf %360, %361 : vector<2x32xf32>
    %363 = math.tanh %362 : vector<2x32xf32>
    %364 = arith.mulf %359, %363 : vector<2x32xf32>
    %c0_96 = arith.constant 0 : index
    %c0_97 = arith.constant 0 : index
    %365 = vector.load %arg5[%c0_96, %c0_97] : memref<32x128xf32, #tpu.memory_space<vmem>>, vector<32x128xf32>
    %cst_98 = arith.constant dense<0.000000e+00> : vector<2x128xf32>
    %366 = tpu.matmul %364, %365, %cst_98 {dimension_numbers = #tpu.dot_dimension_numbers<[1], [0], [0], [1], [0, 0, 1, 1], [], []>} : vector<2x32xf32>, vector<32x128xf32>, vector<2x128xf32> -> vector<2x128xf32>
    %c0_99 = arith.constant 0 : index
    %c0_100 = arith.constant 0 : index
    %367 = vector.load %arg6[%c0_99, %c0_100] : memref<1x128xf32, #tpu.memory_space<vmem>>, vector<1x128xf32>
    %368 = vector.broadcast %367 : vector<1x128xf32> to vector<2x128xf32>
    %369 = arith.addf %366, %368 : vector<2x128xf32>
    %c0_101 = arith.constant 0 : index
    %c0_102 = arith.constant 0 : index
    %370 = vector.load %arg7[%c0_101, %c0_102] : memref<2x128xf32, #tpu.memory_space<vmem>>, vector<2x128xf32>
    tpu.vector_store %arg7[%c0_101, %c0_102], %369 {strides = array<i32>} : memref<2x128xf32, #tpu.memory_space<vmem>>, vector<2x128xf32>,
    return
  }
}

</mosaic_0001>

<llo_original>
// kernel: seq_lstm_forward.1
$region0: #{seq_lstm_forward.1}
  #allocation0 [shape = 'u32[]', space=smem, size = 0x4, offset = 0x4, fixed_abs, tag = 'smem constant byte address 0x4 - core index']
  #allocation1 [shape = 'u32[144,128]{1,0:T(1,128)}', space=vmem, size = 0x12000, scoped, tag = 'internal scratch']
  %s0 = inlined_call_operand.vmem [shape: f32[8,2,128], index: 0, kind: input, shape index: {}]
  %s1 = inlined_call_operand.vmem [shape: f32[32,128], index: 1, kind: input, shape index: {}]
  %s2 = inlined_call_operand.vmem [shape: f32[32,128], index: 2, kind: input, shape index: {}]
  %s3 = inlined_call_operand.vmem [shape: f32[32,128], index: 3, kind: input, shape index: {}]
  %s4 = inlined_call_operand.vmem [shape: f32[1,128], index: 4, kind: input, shape index: {}]
  %s5 = inlined_call_operand.vmem [shape: f32[32,128], index: 5, kind: input, shape index: {}]
  %s6 = inlined_call_operand.vmem [shape: f32[1,128], index: 6, kind: input, shape index: {}]
  %s7 = inlined_call_operand.hbm [shape: f32[2,128], index: 7, kind: output, shape index: {}]
  %s8 = sld [smem:[#allocation0]]
  $region38: #{seq_lstm_forward.1} parent=0
    _
  %s10 = ssub.s32 1, %s8
  %s11 = scalar_select 0, %s10, %s8
  $region1: #{seq_lstm_forward.1} parent=0
    #allocation2 [shape = 'u8[1024]{0}', space=vmem, size = 0x400, scoped, tag = 'output window, operand 0, single buffered']
    #allocation3 [shape = 's32[1]{0}', space=sflag, size = 0x4, scoped, tag = 'scoped memory for seq_lstm_forward.1']
    %12 = vsyncpa [#allocation3], 0
    // Predicated region
    $region2: #{seq_lstm_forward.1} parent=1 // pred_check
      _
    $region3: #{seq_lstm_forward.1} parent=1 // pred_check_branch
      %14 = sbr.rel (0) target = $region5
    $region4: #{seq_lstm_forward.1} parent=1 // pred_region
      _
    $region5: #{seq_lstm_forward.1} parent=1 // pred_fallthru
      _
    // Predicated region
    $region6: #{seq_lstm_forward.1} parent=1 // pred_check
      _
    $region7: #{seq_lstm_forward.1} parent=1 // pred_check_branch
      %16 = sbr.rel (0) target = $region9
    $region8: #{seq_lstm_forward.1} parent=1 // pred_region
      _
    $region9: #{seq_lstm_forward.1} parent=1 // pred_fallthru
      _
    // Predicated region
    $region10: #{seq_lstm_forward.1} parent=1 // pred_check
      _
    $region11: #{seq_lstm_forward.1} parent=1 // pred_check_branch
      %18 = sbr.rel (0) target = $region13
    $region12: #{seq_lstm_forward.1} parent=1 // pred_region
      _
    $region13: #{seq_lstm_forward.1} parent=1 // pred_fallthru
      _
    // Predicated region
    $region14: #{seq_lstm_forward.1} parent=1 // pred_check
      _
    $region15: #{seq_lstm_forward.1} parent=1 // pred_check_branch
      %20 = sbr.rel (0) target = $region17
    $region16: #{seq_lstm_forward.1} parent=1 // pred_region
      _
    $region17: #{seq_lstm_forward.1} parent=1 // pred_fallthru
      _
    // Predicated region
    $region18: #{seq_lstm_forward.1} parent=1 // pred_check
      _
    $region19: #{seq_lstm_forward.1} parent=1 // pred_check_branch
      %22 = sbr.rel (0) target = $region21
    $region20: #{seq_lstm_forward.1} parent=1 // pred_region
      _
    $region21: #{seq_lstm_forward.1} parent=1 // pred_fallthru
      _
    // Predicated region
    $region22: #{seq_lstm_forward.1} parent=1 // pred_check
      _
    $region23: #{seq_lstm_forward.1} parent=1 // pred_check_branch
      %24 = sbr.rel (0) target = $region25
    $region24: #{seq_lstm_forward.1} parent=1 // pred_region
      _
    $region25: #{seq_lstm_forward.1} parent=1 // pred_fallthru
      _
    // Predicated region
    $region26: #{seq_lstm_forward.1} parent=1 // pred_check
      _
    $region27: #{seq_lstm_forward.1} parent=1 // pred_check_branch
      %26 = sbr.rel (0) target = $region29
    $region28: #{seq_lstm_forward.1} parent=1 // pred_region
      _
    $region29: #{seq_lstm_forward.1} parent=1 // pred_fallthru
      _
    %v27 = vld [vmem:[%s1] sm:$0xff]
    %v28 = vld [vmem:[%s1 + $0x8] sm:$0xff]
    %v29 = vld [vmem:[%s1 + $0x10] sm:$0xff]
    %v30 = vld [vmem:[%s1 + $0x18] sm:$0xff]
    %v31 = vld [vmem:[%s2] sm:$0xff]
    %v32 = vld [vmem:[%s2 + $0x8] sm:$0xff]
    %v33 = vld [vmem:[%s2 + $0x10] sm:$0xff]
    %v34 = vld [vmem:[%s2 + $0x18] sm:$0xff]
    %v35 = vld [vmem:[%s3] sm:$0xff]
    %v36 = vld [vmem:[%s3 + $0x8] sm:$0xff]
    %v37 = vld [vmem:[%s3 + $0x10] sm:$0xff]
    %v38 = vld [vmem:[%s3 + $0x18] sm:$0xff]
    %v39 = vld [vmem:[%s4] sm:$0x1]
    %v41 = vlaneseq
    %v42 = vshrl.u32 %v41, 7
    %v43 = vsub.s32 0, %v42
    %v44 = vrot.slane %v39, %v43
    %v46 = vlaneseq
    %v47 = vand.u32 %v46, 127
    %vm48 = vcmp.ge.s32.totalorder %v47, 64
    %vm49 = vcmp.lt.s32.totalorder %v47, 96
    %vm50 = vmand %vm48, %vm49
    %vm51 = vcmask 261120
    %v53 = vsel %vm51, 0.0, 0
    %55 = vmatprep.subr.mxu0 0.0
    %56 = vmatpush1.msra.mxu0 %v35
    %57 = vmatprep.subr.mxu0 0.0
    %58 = vmatpush1.msra.mxu0 %v36
    %59 = vmatprep.subr.mxu0 0.0
    %60 = vmatpush1.msra.mxu0 %v37
    %61 = vmatprep.subr.mxu0 0.0
    %62 = vmatpush1.msra.mxu0 %v38
    %63 = vmatprep.subr.mxu0 0.0
    %64 = vmatpush1.msra.mxu0 0.0
    %65 = vmatprep.subr.mxu0 0.0
    %66 = vmatpush1.msra.mxu0 0.0
    %67 = vmatprep.subr.mxu0 0.0
    %68 = vmatpush1.msra.mxu0 0.0
    %69 = vmatprep.subr.mxu0 0.0
    %70 = vmatpush1.msra.mxu0 0.0
    %71 = vmatprep.subr.mxu0 0.0
    %72 = vmatpush1.msra.mxu0 0.0
    %73 = vmatprep.subr.mxu0 0.0
    %74 = vmatpush1.msra.mxu0 0.0
    %75 = vmatprep.subr.mxu0 0.0
    %76 = vmatpush1.msra.mxu0 0.0
    %77 = vmatprep.subr.mxu0 0.0
    %78 = vmatpush1.msra.mxu0 0.0
    %79 = vmatprep.subr.mxu0 0.0
    %80 = vmatpush1.msra.mxu0 0.0
    %81 = vmatprep.subr.mxu0 0.0
    %82 = vmatpush1.msra.mxu0 0.0
    %83 = vmatprep.subr.mxu0 0.0
    %84 = vmatpush1.msra.mxu0 0.0
    %85 = vmatprep.subr.mxu0 0.0
    %86 = vmatpush1.msra.mxu0 0.0
    %87 = vmatprep.subr.mxu0 0.0
    %88 = vmatpush1.msra.mxu0 0.0
    %89 = vmatprep.subr.mxu0 0.0
    %90 = vmatpush1.msra.mxu0 0.0
    %91 = vmatprep.subr.mxu0 0.0
    %92 = vmatpush1.msra.mxu0 0.0
    %93 = vmatprep.subr.mxu0 0.0
    %94 = vmatpush1.msra.mxu0 0.0
    %95 = vmatprep.subr.mxu0 0.0
    %96 = vmatpush1.msra.mxu0 0.0
    %97 = vmatprep.subr.mxu0 0.0
    %98 = vmatpush1.msra.mxu0 0.0
    %99 = vmatprep.subr.mxu0 0.0
    %100 = vmatpush1.msra.mxu0 0.0
    %101 = vmatprep.subr.mxu0 0.0
    %102 = vmatpush1.msra.mxu0 0.0
    %103 = vmatprep.subr.mxu0 0.0
    %104 = vmatpush1.msra.mxu0 0.0
    %105 = vmatprep.subr.mxu0 0.0
    %106 = vmatpush1.msra.mxu0 0.0
    %107 = vmatprep.subr.mxu0 0.0
    %108 = vmatpush1.msra.mxu0 0.0
    %109 = vmatprep.subr.mxu0 0.0
    %110 = vmatpush1.msra.mxu0 0.0
    %111 = vmatprep.subr.mxu0 0.0
    %112 = vmatpush1.msra.mxu0 0.0
    %113 = vmatprep.subr.mxu0 0.0
    %114 = vmatpush1.msra.mxu0 0.0
    %115 = vmatprep.subr.mxu0 0.0
    %116 = vmatpush1.msra.mxu0 0.0
    %117 = vmatprep.subr.mxu0 0.0
    %118 = vmatpush1.msra.mxu0 0.0
    %119 = vmatprep.mubr.f32.mxu0 0.0
    %120 = vmatmul.mubr.f32.gmra.mrb[0].mxu0 %v53
    %v121 = vpop.f32.mrb[0].mxu0
    %v122 = vadd.f32 %v44, %v121
    %v123 = vpop.f32.mrb[0].mxu0
    %124 = vdwg.mxu0
    %v125 = vld [vmem:[%s0] sm:$0x3]
    %126 = vmatprep.subr.mxu0 0.0
    %127 = vmatpush1.msra.mxu0 %v27
    %128 = vmatprep.subr.mxu0 0.0
    %129 = vmatpush1.msra.mxu0 %v28
    %130 = vmatprep.subr.mxu0 0.0
    %131 = vmatpush1.msra.mxu0 %v29
    %132 = vmatprep.subr.mxu0 0.0
    %133 = vmatpush1.msra.mxu0 %v30
    %134 = vmatprep.subr.mxu0 0.0
    %135 = vmatpush1.msra.mxu0 0.0
    %136 = vmatprep.subr.mxu0 0.0
    %137 = vmatpush1.msra.mxu0 0.0
    %138 = vmatprep.subr.mxu0 0.0
    %139 = vmatpush1.msra.mxu0 0.0
    %140 = vmatprep.subr.mxu0 0.0
    %141 = vmatpush1.msra.mxu0 0.0
    %142 = vmatprep.subr.mxu0 0.0
    %143 = vmatpush1.msra.mxu0 0.0
    %144 = vmatprep.subr.mxu0 0.0
    %145 = vmatpush1.msra.mxu0 0.0
    %146 = vmatprep.subr.mxu0 0.0
    %147 = vmatpush1.msra.mxu0 0.0
    %148 = vmatprep.subr.mxu0 0.0
    %149 = vmatpush1.msra.mxu0 0.0
    %150 = vmatprep.subr.mxu0 0.0
    %151 = vmatpush1.msra.mxu0 0.0
    %152 = vmatprep.subr.mxu0 0.0
    %153 = vmatpush1.msra.mxu0 0.0
    %154 = vmatprep.subr.mxu0 0.0
    %155 = vmatpush1.msra.mxu0 0.0
    %156 = vmatprep.subr.mxu0 0.0
    %157 = vmatpush1.msra.mxu0 0.0
    %158 = vmatprep.subr.mxu0 0.0
    %159 = vmatpush1.msra.mxu0 0.0
    %160 = vmatprep.subr.mxu0 0.0
    %161 = vmatpush1.msra.mxu0 0.0
    %162 = vmatprep.subr.mxu0 0.0
    %163 = vmatpush1.msra.mxu0 0.0
    %164 = vmatprep.subr.mxu0 0.0
    %165 = vmatpush1.msra.mxu0 0.0
    %166 = vmatprep.subr.mxu0 0.0
    %167 = vmatpush1.msra.mxu0 0.0
    %168 = vmatprep.subr.mxu0 0.0
    %169 = vmatpush1.msra.mxu0 0.0
    %170 = vmatprep.subr.mxu0 0.0
    %171 = vmatpush1.msra.mxu0 0.0
    %172 = vmatprep.subr.mxu0 0.0
    %173 = vmatpush1.msra.mxu0 0.0
    %174 = vmatprep.subr.mxu0 0.0
    %175 = vmatpush1.msra.mxu0 0.0
    %176 = vmatprep.subr.mxu0 0.0
    %177 = vmatpush1.msra.mxu0 0.0
    %178 = vmatprep.subr.mxu0 0.0
    %179 = vmatpush1.msra.mxu0 0.0
    %180 = vmatprep.subr.mxu0 0.0
    %181 = vmatpush1.msra.mxu0 0.0
    %182 = vmatprep.subr.mxu0 0.0
    %183 = vmatpush1.msra.mxu0 0.0
    %184 = vmatprep.subr.mxu0 0.0
    %185 = vmatpush1.msra.mxu0 0.0
    %186 = vmatprep.subr.mxu0 0.0
    %187 = vmatpush1.msra.mxu0 0.0
    %188 = vmatprep.subr.mxu0 0.0
    %189 = vmatpush1.msra.mxu0 0.0
    %190 = vmatprep.mubr.f32.mxu0 0.0
    %191 = vmatmul.mubr.f32.gmra.mrb[0].mxu0 %v53
    %v192 = vpop.f32.mrb[0].mxu0
    %v193 = vadd.f32 0.0, %v192
    %v194 = vpop.f32.mrb[0].mxu0
    %195 = vdwg.mxu0
    %v196 = vadd.f32 %v125, %v193
    %v197 = vmul.f32 %v196, 0.5
    %v198 = vsel %vm50, %v196, %v197
    %v199 = vtanh.pop %v198
    %v200 = vmul.f32 %v199, 0.5
    %v201 = vadd.f32 %v200, 0.5
    %v202 = vsel %vm50, %v199, %v201
    %v203 = vmul.f32 %v202, 0.0
    %205 = vrot.lane.b32.xlu0 %v202, 64
    %v206 = vpop.permute.xlu0 %205
    %v208 = vmul.f32 %v202, %v206
    %210 = vrot.lane.b32.xlu0 %v208, 32
    %v211 = vpop.permute.xlu0 %210
    %v213 = vadd.f32 %v203, %v211
    %v214 = vtanh.pop %v213
    %216 = vrot.lane.b32.xlu0 %v214, 64
    %v217 = vpop.permute.xlu0 %216
    %v219 = vmul.f32 %v202, %v217
    %221 = vrot.lane.b32.xlu0 %v219, 32
    %v222 = vpop.permute.xlu0 %221
    %v223 = vsel %vm51, %v222, 0
    %225 = vmatprep.subr.mxu0 0.0
    %226 = vmatpush1.msra.mxu0 %v31
    %227 = vmatprep.subr.mxu0 0.0
    %228 = vmatpush1.msra.mxu0 %v32
    %229 = vmatprep.subr.mxu0 0.0
    %230 = vmatpush1.msra.mxu0 %v33
    %231 = vmatprep.subr.mxu0 0.0
    %232 = vmatpush1.msra.mxu0 %v34
    %233 = vmatprep.subr.mxu0 0.0
    %234 = vmatpush1.msra.mxu0 0.0
    %235 = vmatprep.subr.mxu0 0.0
    %236 = vmatpush1.msra.mxu0 0.0
    %237 = vmatprep.subr.mxu0 0.0
    %238 = vmatpush1.msra.mxu0 0.0
    %239 = vmatprep.subr.mxu0 0.0
    %240 = vmatpush1.msra.mxu0 0.0
    %241 = vmatprep.subr.mxu0 0.0
    %242 = vmatpush1.msra.mxu0 0.0
    %243 = vmatprep.subr.mxu0 0.0
    %244 = vmatpush1.msra.mxu0 0.0
    %245 = vmatprep.subr.mxu0 0.0
    %246 = vmatpush1.msra.mxu0 0.0
    %247 = vmatprep.subr.mxu0 0.0
    %248 = vmatpush1.msra.mxu0 0.0
    %249 = vmatprep.subr.mxu0 0.0
    %250 = vmatpush1.msra.mxu0 0.0
    %251 = vmatprep.subr.mxu0 0.0
    %252 = vmatpush1.msra.mxu0 0.0
    %253 = vmatprep.subr.mxu0 0.0
    %254 = vmatpush1.msra.mxu0 0.0
    %255 = vmatprep.subr.mxu0 0.0
    %256 = vmatpush1.msra.mxu0 0.0
    %257 = vmatprep.subr.mxu0 0.0
    %258 = vmatpush1.msra.mxu0 0.0
    %259 = vmatprep.subr.mxu0 0.0
    %260 = vmatpush1.msra.mxu0 0.0
    %261 = vmatprep.subr.mxu0 0.0
    %262 = vmatpush1.msra.mxu0 0.0
    %263 = vmatprep.subr.mxu0 0.0
    %264 = vmatpush1.msra.mxu0 0.0
    %265 = vmatprep.subr.mxu0 0.0
    %266 = vmatpush1.msra.mxu0 0.0
    %267 = vmatprep.subr.mxu0 0.0
    %268 = vmatpush1.msra.mxu0 0.0
    %269 = vmatprep.subr.mxu0 0.0
    %270 = vmatpush1.msra.mxu0 0.0
    %271 = vmatprep.subr.mxu0 0.0
    %272 = vmatpush1.msra.mxu0 0.0
    %273 = vmatprep.subr.mxu0 0.0
    %274 = vmatpush1.msra.mxu0 0.0
    %275 = vmatprep.subr.mxu0 0.0
    %276 = vmatpush1.msra.mxu0 0.0
    %277 = vmatprep.subr.mxu0 0.0
    %278 = vmatpush1.msra.mxu0 0.0
    %279 = vmatprep.subr.mxu0 0.0
    %280 = vmatpush1.msra.mxu0 0.0
    %281 = vmatprep.subr.mxu0 0.0
    %282 = vmatpush1.msra.mxu0 0.0
    %283 = vmatprep.subr.mxu0 0.0
    %284 = vmatpush1.msra.mxu0 0.0
    %285 = vmatprep.subr.mxu0 0.0
    %286 = vmatpush1.msra.mxu0 0.0
    %287 = vmatprep.subr.mxu0 0.0
    %288 = vmatpush1.msra.mxu0 0.0
    %289 = vmatprep.mubr.f32.mxu0 0.0
    %290 = vmatmul.mubr.f32.gmra.mrb[0].mxu0 %v223
    %v291 = vpop.f32.mrb[0].mxu0
    %v292 = vadd.f32 0.0, %v291
    %v293 = vpop.f32.mrb[0].mxu0
    %294 = vdwg.mxu0
    %v295 = vadd.f32 %v122, %v292
    %v296 = vmul.f32 %v295, 0.5
    %v297 = vsel %vm50, %v295, %v296
    %v298 = vtanh.pop %v297
    %v299 = vmul.f32 %v298, 0.5
    %v300 = vadd.f32 %v299, 0.5
    %v301 = vsel %vm50, %v298, %v300
    %v302 = vmul.f32 %v301, 0.0
    %304 = vrot.lane.b32.xlu0 %v301, 64
    %v305 = vpop.permute.xlu0 %304
    %v307 = vmul.f32 %v301, %v305
    %309 = vrot.lane.b32.xlu0 %v307, 32
    %v310 = vpop.permute.xlu0 %309
    %v312 = vadd.f32 %v302, %v310
    %v313 = vtanh.pop %v312
    %315 = vrot.lane.b32.xlu0 %v313, 64
    %v316 = vpop.permute.xlu0 %315
    %v318 = vmul.f32 %v301, %v316
    %320 = vrot.lane.b32.xlu0 %v318, 32
    %v321 = vpop.permute.xlu0 %320
    %v322 = vsel %vm51, %v321, 0
    %324 = vmatprep.subr.mxu0 0.0
    %325 = vmatpush1.msra.mxu0 %v35
    %326 = vmatprep.subr.mxu0 0.0
    %327 = vmatpush1.msra.mxu0 %v36
    %328 = vmatprep.subr.mxu0 0.0
    %329 = vmatpush1.msra.mxu0 %v37
    %330 = vmatprep.subr.mxu0 0.0
    %331 = vmatpush1.msra.mxu0 %v38
    %332 = vmatprep.subr.mxu0 0.0
    %333 = vmatpush1.msra.mxu0 0.0
    %334 = vmatprep.subr.mxu0 0.0
    %335 = vmatpush1.msra.mxu0 0.0
    %336 = vmatprep.subr.mxu0 0.0
    %337 = vmatpush1.msra.mxu0 0.0
    %338 = vmatprep.subr.mxu0 0.0
    %339 = vmatpush1.msra.mxu0 0.0
    %340 = vmatprep.subr.mxu0 0.0
    %341 = vmatpush1.msra.mxu0 0.0
    %342 = vmatprep.subr.mxu0 0.0
    %343 = vmatpush1.msra.mxu0 0.0
    %344 = vmatprep.subr.mxu0 0.0
    %345 = vmatpush1.msra.mxu0 0.0
    %346 = vmatprep.subr.mxu0 0.0
    %347 = vmatpush1.msra.mxu0 0.0
    %348 = vmatprep.subr.mxu0 0.0
    %349 = vmatpush1.msra.mxu0 0.0
    %350 = vmatprep.subr.mxu0 0.0
    %351 = vmatpush1.msra.mxu0 0.0
    %352 = vmatprep.subr.mxu0 0.0
    %353 = vmatpush1.msra.mxu0 0.0
    %354 = vmatprep.subr.mxu0 0.0
    %355 = vmatpush1.msra.mxu0 0.0
    %356 = vmatprep.subr.mxu0 0.0
    %357 = vmatpush1.msra.mxu0 0.0
    %358 = vmatprep.subr.mxu0 0.0
    %359 = vmatpush1.msra.mxu0 0.0
    %360 = vmatprep.subr.mxu0 0.0
    %361 = vmatpush1.msra.mxu0 0.0
    %362 = vmatprep.subr.mxu0 0.0
    %363 = vmatpush1.msra.mxu0 0.0
    %364 = vmatprep.subr.mxu0 0.0
    %365 = vmatpush1.msra.mxu0 0.0
    %366 = vmatprep.subr.mxu0 0.0
    %367 = vmatpush1.msra.mxu0 0.0
    %368 = vmatprep.subr.mxu0 0.0
    %369 = vmatpush1.msra.mxu0 0.0
    %370 = vmatprep.subr.mxu0 0.0
    %371 = vmatpush1.msra.mxu0 0.0
    %372 = vmatprep.subr.mxu0 0.0
    %373 = vmatpush1.msra.mxu0 0.0
    %374 = vmatprep.subr.mxu0 0.0
    %375 = vmatpush1.msra.mxu0 0.0
    %376 = vmatprep.subr.mxu0 0.0
    %377 = vmatpush1.msra.mxu0 0.0
    %378 = vmatprep.subr.mxu0 0.0
    %379 = vmatpush1.msra.mxu0 0.0
    %380 = vmatprep.subr.mxu0 0.0
    %381 = vmatpush1.msra.mxu0 0.0
    %382 = vmatprep.subr.mxu0 0.0
    %383 = vmatpush1.msra.mxu0 0.0
    %384 = vmatprep.subr.mxu0 0.0
    %385 = vmatpush1.msra.mxu0 0.0
    %386 = vmatprep.subr.mxu0 0.0
    %387 = vmatpush1.msra.mxu0 0.0
    %388 = vmatprep.mubr.f32.mxu0 0.0
    %389 = vmatmul.mubr.f32.gmra.mrb[0].mxu0 %v322
    %v390 = vpop.f32.mrb[0].mxu0
    %v391 = vadd.f32 %v44, %v390
    %v392 = vpop.f32.mrb[0].mxu0
    %393 = vdwg.mxu0
    %s394 = scalar_lea.vmem %s0, 2
    %v395 = vld [vmem:[%s394] sm:$0x3]
    %396 = vmatprep.subr.mxu0 0.0
    %397 = vmatpush1.msra.mxu0 %v27
    %398 = vmatprep.subr.mxu0 0.0
    %399 = vmatpush1.msra.mxu0 %v28
    %400 = vmatprep.subr.mxu0 0.0
    %401 = vmatpush1.msra.mxu0 %v29
    %402 = vmatprep.subr.mxu0 0.0
    %403 = vmatpush1.msra.mxu0 %v30
    %404 = vmatprep.subr.mxu0 0.0
    %405 = vmatpush1.msra.mxu0 0.0
    %406 = vmatprep.subr.mxu0 0.0
    %407 = vmatpush1.msra.mxu0 0.0
    %408 = vmatprep.subr.mxu0 0.0
    %409 = vmatpush1.msra.mxu0 0.0
    %410 = vmatprep.subr.mxu0 0.0
    %411 = vmatpush1.msra.mxu0 0.0
    %412 = vmatprep.subr.mxu0 0.0
    %413 = vmatpush1.msra.mxu0 0.0
    %414 = vmatprep.subr.mxu0 0.0
    %415 = vmatpush1.msra.mxu0 0.0
    %416 = vmatprep.subr.mxu0 0.0
    %417 = vmatpush1.msra.mxu0 0.0
    %418 = vmatprep.subr.mxu0 0.0
    %419 = vmatpush1.msra.mxu0 0.0
    %420 = vmatprep.subr.mxu0 0.0
    %421 = vmatpush1.msra.mxu0 0.0
    %422 = vmatprep.subr.mxu0 0.0
    %423 = vmatpush1.msra.mxu0 0.0
    %424 = vmatprep.subr.mxu0 0.0
    %425 = vmatpush1.msra.mxu0 0.0
    %426 = vmatprep.subr.mxu0 0.0
    %427 = vmatpush1.msra.mxu0 0.0
    %428 = vmatprep.subr.mxu0 0.0
    %429 = vmatpush1.msra.mxu0 0.0
    %430 = vmatprep.subr.mxu0 0.0
    %431 = vmatpush1.msra.mxu0 0.0
    %432 = vmatprep.subr.mxu0 0.0
    %433 = vmatpush1.msra.mxu0 0.0
    %434 = vmatprep.subr.mxu0 0.0
    %435 = vmatpush1.msra.mxu0 0.0
    %436 = vmatprep.subr.mxu0 0.0
    %437 = vmatpush1.msra.mxu0 0.0
    %438 = vmatprep.subr.mxu0 0.0
    %439 = vmatpush1.msra.mxu0 0.0
    %440 = vmatprep.subr.mxu0 0.0
    %441 = vmatpush1.msra.mxu0 0.0
    %442 = vmatprep.subr.mxu0 0.0
    %443 = vmatpush1.msra.mxu0 0.0
    %444 = vmatprep.subr.mxu0 0.0
    %445 = vmatpush1.msra.mxu0 0.0
    %446 = vmatprep.subr.mxu0 0.0
    %447 = vmatpush1.msra.mxu0 0.0
    %448 = vmatprep.subr.mxu0 0.0
    %449 = vmatpush1.msra.mxu0 0.0
    %450 = vmatprep.subr.mxu0 0.0
    %451 = vmatpush1.msra.mxu0 0.0
    %452 = vmatprep.subr.mxu0 0.0
    %453 = vmatpush1.msra.mxu0 0.0
    %454 = vmatprep.subr.mxu0 0.0
    %455 = vmatpush1.msra.mxu0 0.0
    %456 = vmatprep.subr.mxu0 0.0
    %457 = vmatpush1.msra.mxu0 0.0
    %458 = vmatprep.subr.mxu0 0.0
    %459 = vmatpush1.msra.mxu0 0.0
    %460 = vmatprep.mubr.f32.mxu0 0.0
    %461 = vmatmul.mubr.f32.gmra.mrb[0].mxu0 %v223
    %v462 = vpop.f32.mrb[0].mxu0
    %v463 = vadd.f32 0.0, %v462
    %v464 = vpop.f32.mrb[0].mxu0
    %465 = vdwg.mxu0
    %v466 = vadd.f32 %v395, %v463
    %v467 = vmul.f32 %v466, 0.5
    %v468 = vsel %vm50, %v466, %v467
    %v469 = vtanh.pop %v468
    %v470 = vmul.f32 %v469, 0.5
    %v471 = vadd.f32 %v470, 0.5
    %v472 = vsel %vm50, %v469, %v471
    %v473 = vmul.f32 %v472, %v213
    %475 = vrot.lane.b32.xlu0 %v472, 64
    %v476 = vpop.permute.xlu0 %475
    %v478 = vmul.f32 %v472, %v476
    %480 = vrot.lane.b32.xlu0 %v478, 32
    %v481 = vpop.permute.xlu0 %480
    %v483 = vadd.f32 %v473, %v481
    %v484 = vtanh.pop %v483
    %486 = vrot.lane.b32.xlu0 %v484, 64
    %v487 = vpop.permute.xlu0 %486
    %v489 = vmul.f32 %v472, %v487
    %491 = vrot.lane.b32.xlu0 %v489, 32
    %v492 = vpop.permute.xlu0 %491
    %v493 = vsel %vm51, %v492, 0
    %495 = vmatprep.subr.mxu0 0.0
    %496 = vmatpush1.msra.mxu0 %v31
    %497 = vmatprep.subr.mxu0 0.0
    %498 = vmatpush1.msra.mxu0 %v32
    %499 = vmatprep.subr.mxu0 0.0
    %500 = vmatpush1.msra.mxu0 %v33
    %501 = vmatprep.subr.mxu0 0.0
    %502 = vmatpush1.msra.mxu0 %v34
    %503 = vmatprep.subr.mxu0 0.0
    %504 = vmatpush1.msra.mxu0 0.0
    %505 = vmatprep.subr.mxu0 0.0
    %506 = vmatpush1.msra.mxu0 0.0
    %507 = vmatprep.subr.mxu0 0.0
    %508 = vmatpush1.msra.mxu0 0.0
    %509 = vmatprep.subr.mxu0 0.0
    %510 = vmatpush1.msra.mxu0 0.0
    %511 = vmatprep.subr.mxu0 0.0
    %512 = vmatpush1.msra.mxu0 0.0
    %513 = vmatprep.subr.mxu0 0.0
    %514 = vmatpush1.msra.mxu0 0.0
    %515 = vmatprep.subr.mxu0 0.0
    %516 = vmatpush1.msra.mxu0 0.0
    %517 = vmatprep.subr.mxu0 0.0
    %518 = vmatpush1.msra.mxu0 0.0
    %519 = vmatprep.subr.mxu0 0.0
    %520 = vmatpush1.msra.mxu0 0.0
    %521 = vmatprep.subr.mxu0 0.0
    %522 = vmatpush1.msra.mxu0 0.0
    %523 = vmatprep.subr.mxu0 0.0
    %524 = vmatpush1.msra.mxu0 0.0
    %525 = vmatprep.subr.mxu0 0.0
    %526 = vmatpush1.msra.mxu0 0.0
    %527 = vmatprep.subr.mxu0 0.0
    %528 = vmatpush1.msra.mxu0 0.0
    %529 = vmatprep.subr.mxu0 0.0
    %530 = vmatpush1.msra.mxu0 0.0
    %531 = vmatprep.subr.mxu0 0.0
    %532 = vmatpush1.msra.mxu0 0.0
    %533 = vmatprep.subr.mxu0 0.0
    %534 = vmatpush1.msra.mxu0 0.0
    %535 = vmatprep.subr.mxu0 0.0
    %536 = vmatpush1.msra.mxu0 0.0
    %537 = vmatprep.subr.mxu0 0.0
    %538 = vmatpush1.msra.mxu0 0.0
    %539 = vmatprep.subr.mxu0 0.0
    %540 = vmatpush1.msra.mxu0 0.0
    %541 = vmatprep.subr.mxu0 0.0
    %542 = vmatpush1.msra.mxu0 0.0
    %543 = vmatprep.subr.mxu0 0.0
    %544 = vmatpush1.msra.mxu0 0.0
    %545 = vmatprep.subr.mxu0 0.0
    %546 = vmatpush1.msra.mxu0 0.0
    %547 = vmatprep.subr.mxu0 0.0
    %548 = vmatpush1.msra.mxu0 0.0
    %549 = vmatprep.subr.mxu0 0.0
    %550 = vmatpush1.msra.mxu0 0.0
    %551 = vmatprep.subr.mxu0 0.0
    %552 = vmatpush1.msra.mxu0 0.0
    %553 = vmatprep.subr.mxu0 0.0
    %554 = vmatpush1.msra.mxu0 0.0
    %555 = vmatprep.subr.mxu0 0.0
    %556 = vmatpush1.msra.mxu0 0.0
    %557 = vmatprep.subr.mxu0 0.0
    %558 = vmatpush1.msra.mxu0 0.0
    %559 = vmatprep.mubr.f32.mxu0 0.0
    %560 = vmatmul.mubr.f32.gmra.mrb[0].mxu0 %v493
    %v561 = vpop.f32.mrb[0].mxu0
    %v562 = vadd.f32 0.0, %v561
    %v563 = vpop.f32.mrb[0].mxu0
    %564 = vdwg.mxu0
    %v565 = vadd.f32 %v391, %v562
    %v566 = vmul.f32 %v565, 0.5
    %v567 = vsel %vm50, %v565, %v566
    %v568 = vtanh.pop %v567
    %v569 = vmul.f32 %v568, 0.5
    %v570 = vadd.f32 %v569, 0.5
    %v571 = vsel %vm50, %v568, %v570
    %v572 = vmul.f32 %v571, %v312
    %574 = vrot.lane.b32.xlu0 %v571, 64
    %v575 = vpop.permute.xlu0 %574
    %v577 = vmul.f32 %v571, %v575
    %579 = vrot.lane.b32.xlu0 %v577, 32
    %v580 = vpop.permute.xlu0 %579
    %v582 = vadd.f32 %v572, %v580
    %v583 = vtanh.pop %v582
    %585 = vrot.lane.b32.xlu0 %v583, 64
    %v586 = vpop.permute.xlu0 %585
    %v588 = vmul.f32 %v571, %v586
    %590 = vrot.lane.b32.xlu0 %v588, 32
    %v591 = vpop.permute.xlu0 %590
    %v592 = vsel %vm51, %v591, 0
    %594 = vmatprep.subr.mxu0 0.0
    %595 = vmatpush1.msra.mxu0 %v35
    %596 = vmatprep.subr.mxu0 0.0
    %597 = vmatpush1.msra.mxu0 %v36
    %598 = vmatprep.subr.mxu0 0.0
    %599 = vmatpush1.msra.mxu0 %v37
    %600 = vmatprep.subr.mxu0 0.0
    %601 = vmatpush1.msra.mxu0 %v38
    %602 = vmatprep.subr.mxu0 0.0
    %603 = vmatpush1.msra.mxu0 0.0
    %604 = vmatprep.subr.mxu0 0.0
    %605 = vmatpush1.msra.mxu0 0.0
    %606 = vmatprep.subr.mxu0 0.0
    %607 = vmatpush1.msra.mxu0 0.0
    %608 = vmatprep.subr.mxu0 0.0
    %609 = vmatpush1.msra.mxu0 0.0
    %610 = vmatprep.subr.mxu0 0.0
    %611 = vmatpush1.msra.mxu0 0.0
    %612 = vmatprep.subr.mxu0 0.0
    %613 = vmatpush1.msra.mxu0 0.0
    %614 = vmatprep.subr.mxu0 0.0
    %615 = vmatpush1.msra.mxu0 0.0
    %616 = vmatprep.subr.mxu0 0.0
    %617 = vmatpush1.msra.mxu0 0.0
    %618 = vmatprep.subr.mxu0 0.0
    %619 = vmatpush1.msra.mxu0 0.0
    %620 = vmatprep.subr.mxu0 0.0
    %621 = vmatpush1.msra.mxu0 0.0
    %622 = vmatprep.subr.mxu0 0.0
    %623 = vmatpush1.msra.mxu0 0.0
    %624 = vmatprep.subr.mxu0 0.0
    %625 = vmatpush1.msra.mxu0 0.0
    %626 = vmatprep.subr.mxu0 0.0
    %627 = vmatpush1.msra.mxu0 0.0
    %628 = vmatprep.subr.mxu0 0.0
    %629 = vmatpush1.msra.mxu0 0.0
    %630 = vmatprep.subr.mxu0 0.0
    %631 = vmatpush1.msra.mxu0 0.0
    %632 = vmatprep.subr.mxu0 0.0
    %633 = vmatpush1.msra.mxu0 0.0
    %634 = vmatprep.subr.mxu0 0.0
    %635 = vmatpush1.msra.mxu0 0.0
    %636 = vmatprep.subr.mxu0 0.0
    %637 = vmatpush1.msra.mxu0 0.0
    %638 = vmatprep.subr.mxu0 0.0
    %639 = vmatpush1.msra.mxu0 0.0
    %640 = vmatprep.subr.mxu0 0.0
    %641 = vmatpush1.msra.mxu0 0.0
    %642 = vmatprep.subr.mxu0 0.0
    %643 = vmatpush1.msra.mxu0 0.0
    %644 = vmatprep.subr.mxu0 0.0
    %645 = vmatpush1.msra.mxu0 0.0
    %646 = vmatprep.subr.mxu0 0.0
    %647 = vmatpush1.msra.mxu0 0.0
    %648 = vmatprep.subr.mxu0 0.0
    %649 = vmatpush1.msra.mxu0 0.0
    %650 = vmatprep.subr.mxu0 0.0
    %651 = vmatpush1.msra.mxu0 0.0
    %652 = vmatprep.subr.mxu0 0.0
    %653 = vmatpush1.msra.mxu0 0.0
    %654 = vmatprep.subr.mxu0 0.0
    %655 = vmatpush1.msra.mxu0 0.0
    %656 = vmatprep.subr.mxu0 0.0
    %657 = vmatpush1.msra.mxu0 0.0
    %658 = vmatprep.mubr.f32.mxu0 0.0
    %659 = vmatmul.mubr.f32.gmra.mrb[0].mxu0 %v592
    %v660 = vpop.f32.mrb[0].mxu0
    %v661 = vadd.f32 %v44, %v660
    %v662 = vpop.f32.mrb[0].mxu0
    %663 = vdwg.mxu0
    %s664 = scalar_lea.vmem %s0, 4
    %v665 = vld [vmem:[%s664] sm:$0x3]
    %666 = vmatprep.subr.mxu0 0.0
    %667 = vmatpush1.msra.mxu0 %v27
    %668 = vmatprep.subr.mxu0 0.0
    %669 = vmatpush1.msra.mxu0 %v28
    %670 = vmatprep.subr.mxu0 0.0
    %671 = vmatpush1.msra.mxu0 %v29
    %672 = vmatprep.subr.mxu0 0.0
    %673 = vmatpush1.msra.mxu0 %v30
    %674 = vmatprep.subr.mxu0 0.0
    %675 = vmatpush1.msra.mxu0 0.0
    %676 = vmatprep.subr.mxu0 0.0
    %677 = vmatpush1.msra.mxu0 0.0
    %678 = vmatprep.subr.mxu0 0.0
    %679 = vmatpush1.msra.mxu0 0.0
    %680 = vmatprep.subr.mxu0 0.0
    %681 = vmatpush1.msra.mxu0 0.0
    %682 = vmatprep.subr.mxu0 0.0
    %683 = vmatpush1.msra.mxu0 0.0
    %684 = vmatprep.subr.mxu0 0.0
    %685 = vmatpush1.msra.mxu0 0.0
    %686 = vmatprep.subr.mxu0 0.0
    %687 = vmatpush1.msra.mxu0 0.0
    %688 = vmatprep.subr.mxu0 0.0
    %689 = vmatpush1.msra.mxu0 0.0
    %690 = vmatprep.subr.mxu0 0.0
    %691 = vmatpush1.msra.mxu0 0.0
    %692 = vmatprep.subr.mxu0 0.0
    %693 = vmatpush1.msra.mxu0 0.0
    %694 = vmatprep.subr.mxu0 0.0
    %695 = vmatpush1.msra.mxu0 0.0
    %696 = vmatprep.subr.mxu0 0.0
    %697 = vmatpush1.msra.mxu0 0.0
    %698 = vmatprep.subr.mxu0 0.0
    %699 = vmatpush1.msra.mxu0 0.0
    %700 = vmatprep.subr.mxu0 0.0
    %701 = vmatpush1.msra.mxu0 0.0
    %702 = vmatprep.subr.mxu0 0.0
    %703 = vmatpush1.msra.mxu0 0.0
    %704 = vmatprep.subr.mxu0 0.0
    %705 = vmatpush1.msra.mxu0 0.0
    %706 = vmatprep.subr.mxu0 0.0
    %707 = vmatpush1.msra.mxu0 0.0
    %708 = vmatprep.subr.mxu0 0.0
    %709 = vmatpush1.msra.mxu0 0.0
    %710 = vmatprep.subr.mxu0 0.0
    %711 = vmatpush1.msra.mxu0 0.0
    %712 = vmatprep.subr.mxu0 0.0
    %713 = vmatpush1.msra.mxu0 0.0
    %714 = vmatprep.subr.mxu0 0.0
    %715 = vmatpush1.msra.mxu0 0.0
    %716 = vmatprep.subr.mxu0 0.0
    %717 = vmatpush1.msra.mxu0 0.0
    %718 = vmatprep.subr.mxu0 0.0
    %719 = vmatpush1.msra.mxu0 0.0
    %720 = vmatprep.subr.mxu0 0.0
    %721 = vmatpush1.msra.mxu0 0.0
    %722 = vmatprep.subr.mxu0 0.0
    %723 = vmatpush1.msra.mxu0 0.0
    %724 = vmatprep.subr.mxu0 0.0
    %725 = vmatpush1.msra.mxu0 0.0
    %726 = vmatprep.subr.mxu0 0.0
    %727 = vmatpush1.msra.mxu0 0.0
    %728 = vmatprep.subr.mxu0 0.0
    %729 = vmatpush1.msra.mxu0 0.0
    %730 = vmatprep.mubr.f32.mxu0 0.0
    %731 = vmatmul.mubr.f32.gmra.mrb[0].mxu0 %v493
    %v732 = vpop.f32.mrb[0].mxu0
    %v733 = vadd.f32 0.0, %v732
    %v734 = vpop.f32.mrb[0].mxu0
    %735 = vdwg.mxu0
    %v736 = vadd.f32 %v665, %v733
    %v737 = vmul.f32 %v736, 0.5
    %v738 = vsel %vm50, %v736, %v737
    %v739 = vtanh.pop %v738
    %v740 = vmul.f32 %v739, 0.5
    %v741 = vadd.f32 %v740, 0.5
    %v742 = vsel %vm50, %v739, %v741
    %v743 = vmul.f32 %v742, %v483
    %745 = vrot.lane.b32.xlu0 %v742, 64
    %v746 = vpop.permute.xlu0 %745
    %v748 = vmul.f32 %v742, %v746
    %750 = vrot.lane.b32.xlu0 %v748, 32
    %v751 = vpop.permute.xlu0 %750
    %v753 = vadd.f32 %v743, %v751
    %v754 = vtanh.pop %v753
    %756 = vrot.lane.b32.xlu0 %v754, 64
    %v757 = vpop.permute.xlu0 %756
    %v759 = vmul.f32 %v742, %v757
    %761 = vrot.lane.b32.xlu0 %v759, 32
    %v762 = vpop.permute.xlu0 %761
    %v763 = vsel %vm51, %v762, 0
    %765 = vmatprep.subr.mxu0 0.0
    %766 = vmatpush1.msra.mxu0 %v31
    %767 = vmatprep.subr.mxu0 0.0
    %768 = vmatpush1.msra.mxu0 %v32
    %769 = vmatprep.subr.mxu0 0.0
    %770 = vmatpush1.msra.mxu0 %v33
    %771 = vmatprep.subr.mxu0 0.0
    %772 = vmatpush1.msra.mxu0 %v34
    %773 = vmatprep.subr.mxu0 0.0
    %774 = vmatpush1.msra.mxu0 0.0
    %775 = vmatprep.subr.mxu0 0.0
    %776 = vmatpush1.msra.mxu0 0.0
    %777 = vmatprep.subr.mxu0 0.0
    %778 = vmatpush1.msra.mxu0 0.0
    %779 = vmatprep.subr.mxu0 0.0
    %780 = vmatpush1.msra.mxu0 0.0
    %781 = vmatprep.subr.mxu0 0.0
    %782 = vmatpush1.msra.mxu0 0.0
    %783 = vmatprep.subr.mxu0 0.0
    %784 = vmatpush1.msra.mxu0 0.0
    %785 = vmatprep.subr.mxu0 0.0
    %786 = vmatpush1.msra.mxu0 0.0
    %787 = vmatprep.subr.mxu0 0.0
    %788 = vmatpush1.msra.mxu0 0.0
    %789 = vmatprep.subr.mxu0 0.0
    %790 = vmatpush1.msra.mxu0 0.0
    %791 = vmatprep.subr.mxu0 0.0
    %792 = vmatpush1.msra.mxu0 0.0
    %793 = vmatprep.subr.mxu0 0.0
    %794 = vmatpush1.msra.mxu0 0.0
    %795 = vmatprep.subr.mxu0 0.0
    %796 = vmatpush1.msra.mxu0 0.0
    %797 = vmatprep.subr.mxu0 0.0
    %798 = vmatpush1.msra.mxu0 0.0
    %799 = vmatprep.subr.mxu0 0.0
    %800 = vmatpush1.msra.mxu0 0.0
    %801 = vmatprep.subr.mxu0 0.0
    %802 = vmatpush1.msra.mxu0 0.0
    %803 = vmatprep.subr.mxu0 0.0
    %804 = vmatpush1.msra.mxu0 0.0
    %805 = vmatprep.subr.mxu0 0.0
    %806 = vmatpush1.msra.mxu0 0.0
    %807 = vmatprep.subr.mxu0 0.0
    %808 = vmatpush1.msra.mxu0 0.0
    %809 = vmatprep.subr.mxu0 0.0
    %810 = vmatpush1.msra.mxu0 0.0
    %811 = vmatprep.subr.mxu0 0.0
    %812 = vmatpush1.msra.mxu0 0.0
    %813 = vmatprep.subr.mxu0 0.0
    %814 = vmatpush1.msra.mxu0 0.0
    %815 = vmatprep.subr.mxu0 0.0
    %816 = vmatpush1.msra.mxu0 0.0
    %817 = vmatprep.subr.mxu0 0.0
    %818 = vmatpush1.msra.mxu0 0.0
    %819 = vmatprep.subr.mxu0 0.0
    %820 = vmatpush1.msra.mxu0 0.0
    %821 = vmatprep.subr.mxu0 0.0
    %822 = vmatpush1.msra.mxu0 0.0
    %823 = vmatprep.subr.mxu0 0.0
    %824 = vmatpush1.msra.mxu0 0.0
    %825 = vmatprep.subr.mxu0 0.0
    %826 = vmatpush1.msra.mxu0 0.0
    %827 = vmatprep.subr.mxu0 0.0
    %828 = vmatpush1.msra.mxu0 0.0
    %829 = vmatprep.mubr.f32.mxu0 0.0
    %830 = vmatmul.mubr.f32.gmra.mrb[0].mxu0 %v763
    %v831 = vpop.f32.mrb[0].mxu0
    %v832 = vadd.f32 0.0, %v831
    %v833 = vpop.f32.mrb[0].mxu0
    %834 = vdwg.mxu0
    %v835 = vadd.f32 %v661, %v832
    %v836 = vmul.f32 %v835, 0.5
    %v837 = vsel %vm50, %v835, %v836
    %v838 = vtanh.pop %v837
    %v839 = vmul.f32 %v838, 0.5
    %v840 = vadd.f32 %v839, 0.5
    %v841 = vsel %vm50, %v838, %v840
    %v842 = vmul.f32 %v841, %v582
    %844 = vrot.lane.b32.xlu0 %v841, 64
    %v845 = vpop.permute.xlu0 %844
    %v847 = vmul.f32 %v841, %v845
    %849 = vrot.lane.b32.xlu0 %v847, 32
    %v850 = vpop.permute.xlu0 %849
    %v852 = vadd.f32 %v842, %v850
    %v853 = vtanh.pop %v852
    %855 = vrot.lane.b32.xlu0 %v853, 64
    %v856 = vpop.permute.xlu0 %855
    %v858 = vmul.f32 %v841, %v856
    %860 = vrot.lane.b32.xlu0 %v858, 32
    %v861 = vpop.permute.xlu0 %860
    %v862 = vsel %vm51, %v861, 0
    %864 = vmatprep.subr.mxu0 0.0
    %865 = vmatpush1.msra.mxu0 %v35
    %866 = vmatprep.subr.mxu0 0.0
    %867 = vmatpush1.msra.mxu0 %v36
    %868 = vmatprep.subr.mxu0 0.0
    %869 = vmatpush1.msra.mxu0 %v37
    %870 = vmatprep.subr.mxu0 0.0
    %871 = vmatpush1.msra.mxu0 %v38
    %872 = vmatprep.subr.mxu0 0.0
    %873 = vmatpush1.msra.mxu0 0.0
    %874 = vmatprep.subr.mxu0 0.0
    %875 = vmatpush1.msra.mxu0 0.0
    %876 = vmatprep.subr.mxu0 0.0
    %877 = vmatpush1.msra.mxu0 0.0
    %878 = vmatprep.subr.mxu0 0.0
    %879 = vmatpush1.msra.mxu0 0.0
    %880 = vmatprep.subr.mxu0 0.0
    %881 = vmatpush1.msra.mxu0 0.0
    %882 = vmatprep.subr.mxu0 0.0
    %883 = vmatpush1.msra.mxu0 0.0
    %884 = vmatprep.subr.mxu0 0.0
    %885 = vmatpush1.msra.mxu0 0.0
    %886 = vmatprep.subr.mxu0 0.0
    %887 = vmatpush1.msra.mxu0 0.0
    %888 = vmatprep.subr.mxu0 0.0
    %889 = vmatpush1.msra.mxu0 0.0
    %890 = vmatprep.subr.mxu0 0.0
    %891 = vmatpush1.msra.mxu0 0.0
    %892 = vmatprep.subr.mxu0 0.0
    %893 = vmatpush1.msra.mxu0 0.0
    %894 = vmatprep.subr.mxu0 0.0
    %895 = vmatpush1.msra.mxu0 0.0
    %896 = vmatprep.subr.mxu0 0.0
    %897 = vmatpush1.msra.mxu0 0.0
    %898 = vmatprep.subr.mxu0 0.0
    %899 = vmatpush1.msra.mxu0 0.0
    %900 = vmatprep.subr.mxu0 0.0
    %901 = vmatpush1.msra.mxu0 0.0
    %902 = vmatprep.subr.mxu0 0.0
    %903 = vmatpush1.msra.mxu0 0.0
    %904 = vmatprep.subr.mxu0 0.0
    %905 = vmatpush1.msra.mxu0 0.0
    %906 = vmatprep.subr.mxu0 0.0
    %907 = vmatpush1.msra.mxu0 0.0
    %908 = vmatprep.subr.mxu0 0.0
    %909 = vmatpush1.msra.mxu0 0.0
    %910 = vmatprep.subr.mxu0 0.0
    %911 = vmatpush1.msra.mxu0 0.0
    %912 = vmatprep.subr.mxu0 0.0
    %913 = vmatpush1.msra.mxu0 0.0
    %914 = vmatprep.subr.mxu0 0.0
    %915 = vmatpush1.msra.mxu0 0.0
    %916 = vmatprep.subr.mxu0 0.0
    %917 = vmatpush1.msra.mxu0 0.0
    %918 = vmatprep.subr.mxu0 0.0
    %919 = vmatpush1.msra.mxu0 0.0
    %920 = vmatprep.subr.mxu0 0.0
    %921 = vmatpush1.msra.mxu0 0.0
    %922 = vmatprep.subr.mxu0 0.0
    %923 = vmatpush1.msra.mxu0 0.0
    %924 = vmatprep.subr.mxu0 0.0
    %925 = vmatpush1.msra.mxu0 0.0
    %926 = vmatprep.subr.mxu0 0.0
    %927 = vmatpush1.msra.mxu0 0.0
    %928 = vmatprep.mubr.f32.mxu0 0.0
    %929 = vmatmul.mubr.f32.gmra.mrb[0].mxu0 %v862
    %v930 = vpop.f32.mrb[0].mxu0
    %v931 = vadd.f32 %v44, %v930
    %v932 = vpop.f32.mrb[0].mxu0
    %933 = vdwg.mxu0
    %s934 = scalar_lea.vmem %s0, 6
    %v935 = vld [vmem:[%s934] sm:$0x3]
    %936 = vmatprep.subr.mxu0 0.0
    %937 = vmatpush1.msra.mxu0 %v27
    %938 = vmatprep.subr.mxu0 0.0
    %939 = vmatpush1.msra.mxu0 %v28
    %940 = vmatprep.subr.mxu0 0.0
    %941 = vmatpush1.msra.mxu0 %v29
    %942 = vmatprep.subr.mxu0 0.0
    %943 = vmatpush1.msra.mxu0 %v30
    %944 = vmatprep.subr.mxu0 0.0
    %945 = vmatpush1.msra.mxu0 0.0
    %946 = vmatprep.subr.mxu0 0.0
    %947 = vmatpush1.msra.mxu0 0.0
    %948 = vmatprep.subr.mxu0 0.0
    %949 = vmatpush1.msra.mxu0 0.0
    %950 = vmatprep.subr.mxu0 0.0
    %951 = vmatpush1.msra.mxu0 0.0
    %952 = vmatprep.subr.mxu0 0.0
    %953 = vmatpush1.msra.mxu0 0.0
    %954 = vmatprep.subr.mxu0 0.0
    %955 = vmatpush1.msra.mxu0 0.0
    %956 = vmatprep.subr.mxu0 0.0
    %957 = vmatpush1.msra.mxu0 0.0
    %958 = vmatprep.subr.mxu0 0.0
    %959 = vmatpush1.msra.mxu0 0.0
    %960 = vmatprep.subr.mxu0 0.0
    %961 = vmatpush1.msra.mxu0 0.0
    %962 = vmatprep.subr.mxu0 0.0
    %963 = vmatpush1.msra.mxu0 0.0
    %964 = vmatprep.subr.mxu0 0.0
    %965 = vmatpush1.msra.mxu0 0.0
    %966 = vmatprep.subr.mxu0 0.0
    %967 = vmatpush1.msra.mxu0 0.0
    %968 = vmatprep.subr.mxu0 0.0
    %969 = vmatpush1.msra.mxu0 0.0
    %970 = vmatprep.subr.mxu0 0.0
    %971 = vmatpush1.msra.mxu0 0.0
    %972 = vmatprep.subr.mxu0 0.0
    %973 = vmatpush1.msra.mxu0 0.0
    %974 = vmatprep.subr.mxu0 0.0
    %975 = vmatpush1.msra.mxu0 0.0
    %976 = vmatprep.subr.mxu0 0.0
    %977 = vmatpush1.msra.mxu0 0.0
    %978 = vmatprep.subr.mxu0 0.0
    %979 = vmatpush1.msra.mxu0 0.0
    %980 = vmatprep.subr.mxu0 0.0
    %981 = vmatpush1.msra.mxu0 0.0
    %982 = vmatprep.subr.mxu0 0.0
    %983 = vmatpush1.msra.mxu0 0.0
    %984 = vmatprep.subr.mxu0 0.0
    %985 = vmatpush1.msra.mxu0 0.0
    %986 = vmatprep.subr.mxu0 0.0
    %987 = vmatpush1.msra.mxu0 0.0
    %988 = vmatprep.subr.mxu0 0.0
    %989 = vmatpush1.msra.mxu0 0.0
    %990 = vmatprep.subr.mxu0 0.0
    %991 = vmatpush1.msra.mxu0 0.0
    %992 = vmatprep.subr.mxu0 0.0
    %993 = vmatpush1.msra.mxu0 0.0
    %994 = vmatprep.subr.mxu0 0.0
    %995 = vmatpush1.msra.mxu0 0.0
    %996 = vmatprep.subr.mxu0 0.0
    %997 = vmatpush1.msra.mxu0 0.0
    %998 = vmatprep.subr.mxu0 0.0
    %999 = vmatpush1.msra.mxu0 0.0
    %1000 = vmatprep.mubr.f32.mxu0 0.0
    %1001 = vmatmul.mubr.f32.gmra.mrb[0].mxu0 %v763
    %v1002 = vpop.f32.mrb[0].mxu0
    %v1003 = vadd.f32 0.0, %v1002
    %v1004 = vpop.f32.mrb[0].mxu0
    %1005 = vdwg.mxu0
    %v1006 = vadd.f32 %v935, %v1003
    %v1007 = vmul.f32 %v1006, 0.5
    %v1008 = vsel %vm50, %v1006, %v1007
    %v1009 = vtanh.pop %v1008
    %v1010 = vmul.f32 %v1009, 0.5
    %v1011 = vadd.f32 %v1010, 0.5
    %v1012 = vsel %vm50, %v1009, %v1011
    %v1013 = vmul.f32 %v1012, %v753
    %1015 = vrot.lane.b32.xlu0 %v1012, 64
    %v1016 = vpop.permute.xlu0 %1015
    %v1018 = vmul.f32 %v1012, %v1016
    %1020 = vrot.lane.b32.xlu0 %v1018, 32
    %v1021 = vpop.permute.xlu0 %1020
    %v1023 = vadd.f32 %v1013, %v1021
    %v1024 = vtanh.pop %v1023
    %1026 = vrot.lane.b32.xlu0 %v1024, 64
    %v1027 = vpop.permute.xlu0 %1026
    %v1029 = vmul.f32 %v1012, %v1027
    %1031 = vrot.lane.b32.xlu0 %v1029, 32
    %v1032 = vpop.permute.xlu0 %1031
    %v1033 = vsel %vm51, %v1032, 0
    %1035 = vmatprep.subr.mxu0 0.0
    %1036 = vmatpush1.msra.mxu0 %v31
    %1037 = vmatprep.subr.mxu0 0.0
    %1038 = vmatpush1.msra.mxu0 %v32
    %1039 = vmatprep.subr.mxu0 0.0
    %1040 = vmatpush1.msra.mxu0 %v33
    %1041 = vmatprep.subr.mxu0 0.0
    %1042 = vmatpush1.msra.mxu0 %v34
    %1043 = vmatprep.subr.mxu0 0.0
    %1044 = vmatpush1.msra.mxu0 0.0
    %1045 = vmatprep.subr.mxu0 0.0
    %1046 = vmatpush1.msra.mxu0 0.0
    %1047 = vmatprep.subr.mxu0 0.0
    %1048 = vmatpush1.msra.mxu0 0.0
    %1049 = vmatprep.subr.mxu0 0.0
    %1050 = vmatpush1.msra.mxu0 0.0
    %1051 = vmatprep.subr.mxu0 0.0
    %1052 = vmatpush1.msra.mxu0 0.0
    %1053 = vmatprep.subr.mxu0 0.0
    %1054 = vmatpush1.msra.mxu0 0.0
    %1055 = vmatprep.subr.mxu0 0.0
    %1056 = vmatpush1.msra.mxu0 0.0
    %1057 = vmatprep.subr.mxu0 0.0
    %1058 = vmatpush1.msra.mxu0 0.0
    %1059 = vmatprep.subr.mxu0 0.0
    %1060 = vmatpush1.msra.mxu0 0.0
    %1061 = vmatprep.subr.mxu0 0.0
    %1062 = vmatpush1.msra.mxu0 0.0
    %1063 = vmatprep.subr.mxu0 0.0
    %1064 = vmatpush1.msra.mxu0 0.0
    %1065 = vmatprep.subr.mxu0 0.0
    %1066 = vmatpush1.msra.mxu0 0.0
    %1067 = vmatprep.subr.mxu0 0.0
    %1068 = vmatpush1.msra.mxu0 0.0
    %1069 = vmatprep.subr.mxu0 0.0
    %1070 = vmatpush1.msra.mxu0 0.0
    %1071 = vmatprep.subr.mxu0 0.0
    %1072 = vmatpush1.msra.mxu0 0.0
    %1073 = vmatprep.subr.mxu0 0.0
    %1074 = vmatpush1.msra.mxu0 0.0
    %1075 = vmatprep.subr.mxu0 0.0
    %1076 = vmatpush1.msra.mxu0 0.0
    %1077 = vmatprep.subr.mxu0 0.0
    %1078 = vmatpush1.msra.mxu0 0.0
    %1079 = vmatprep.subr.mxu0 0.0
    %1080 = vmatpush1.msra.mxu0 0.0
    %1081 = vmatprep.subr.mxu0 0.0
    %1082 = vmatpush1.msra.mxu0 0.0
    %1083 = vmatprep.subr.mxu0 0.0
    %1084 = vmatpush1.msra.mxu0 0.0
    %1085 = vmatprep.subr.mxu0 0.0
    %1086 = vmatpush1.msra.mxu0 0.0
    %1087 = vmatprep.subr.mxu0 0.0
    %1088 = vmatpush1.msra.mxu0 0.0
    %1089 = vmatprep.subr.mxu0 0.0
    %1090 = vmatpush1.msra.mxu0 0.0
    %1091 = vmatprep.subr.mxu0 0.0
    %1092 = vmatpush1.msra.mxu0 0.0
    %1093 = vmatprep.subr.mxu0 0.0
    %1094 = vmatpush1.msra.mxu0 0.0
    %1095 = vmatprep.subr.mxu0 0.0
    %1096 = vmatpush1.msra.mxu0 0.0
    %1097 = vmatprep.subr.mxu0 0.0
    %1098 = vmatpush1.msra.mxu0 0.0
    %1099 = vmatprep.mubr.f32.mxu0 0.0
    %1100 = vmatmul.mubr.f32.gmra.mrb[0].mxu0 %v1033
    %v1101 = vpop.f32.mrb[0].mxu0
    %v1102 = vadd.f32 0.0, %v1101
    %v1103 = vpop.f32.mrb[0].mxu0
    %1104 = vdwg.mxu0
    %v1105 = vadd.f32 %v931, %v1102
    %v1106 = vmul.f32 %v1105, 0.5
    %v1107 = vsel %vm50, %v1105, %v1106
    %v1108 = vtanh.pop %v1107
    %v1109 = vmul.f32 %v1108, 0.5
    %v1110 = vadd.f32 %v1109, 0.5
    %v1111 = vsel %vm50, %v1108, %v1110
    %v1112 = vmul.f32 %v1111, %v852
    %1114 = vrot.lane.b32.xlu0 %v1111, 64
    %v1115 = vpop.permute.xlu0 %1114
    %v1117 = vmul.f32 %v1111, %v1115
    %1119 = vrot.lane.b32.xlu0 %v1117, 32
    %v1120 = vpop.permute.xlu0 %1119
    %v1122 = vadd.f32 %v1112, %v1120
    %v1123 = vtanh.pop %v1122
    %1125 = vrot.lane.b32.xlu0 %v1123, 64
    %v1126 = vpop.permute.xlu0 %1125
    %v1128 = vmul.f32 %v1111, %v1126
    %1130 = vrot.lane.b32.xlu0 %v1128, 32
    %v1131 = vpop.permute.xlu0 %1130
    %v1132 = vsel %vm51, %v1131, 0
    %1134 = vmatprep.subr.mxu0 0.0
    %1135 = vmatpush1.msra.mxu0 %v35
    %1136 = vmatprep.subr.mxu0 0.0
    %1137 = vmatpush1.msra.mxu0 %v36
    %1138 = vmatprep.subr.mxu0 0.0
    %1139 = vmatpush1.msra.mxu0 %v37
    %1140 = vmatprep.subr.mxu0 0.0
    %1141 = vmatpush1.msra.mxu0 %v38
    %1142 = vmatprep.subr.mxu0 0.0
    %1143 = vmatpush1.msra.mxu0 0.0
    %1144 = vmatprep.subr.mxu0 0.0
    %1145 = vmatpush1.msra.mxu0 0.0
    %1146 = vmatprep.subr.mxu0 0.0
    %1147 = vmatpush1.msra.mxu0 0.0
    %1148 = vmatprep.subr.mxu0 0.0
    %1149 = vmatpush1.msra.mxu0 0.0
    %1150 = vmatprep.subr.mxu0 0.0
    %1151 = vmatpush1.msra.mxu0 0.0
    %1152 = vmatprep.subr.mxu0 0.0
    %1153 = vmatpush1.msra.mxu0 0.0
    %1154 = vmatprep.subr.mxu0 0.0
    %1155 = vmatpush1.msra.mxu0 0.0
    %1156 = vmatprep.subr.mxu0 0.0
    %1157 = vmatpush1.msra.mxu0 0.0
    %1158 = vmatprep.subr.mxu0 0.0
    %1159 = vmatpush1.msra.mxu0 0.0
    %1160 = vmatprep.subr.mxu0 0.0
    %1161 = vmatpush1.msra.mxu0 0.0
    %1162 = vmatprep.subr.mxu0 0.0
    %1163 = vmatpush1.msra.mxu0 0.0
    %1164 = vmatprep.subr.mxu0 0.0
    %1165 = vmatpush1.msra.mxu0 0.0
    %1166 = vmatprep.subr.mxu0 0.0
    %1167 = vmatpush1.msra.mxu0 0.0
    %1168 = vmatprep.subr.mxu0 0.0
    %1169 = vmatpush1.msra.mxu0 0.0
    %1170 = vmatprep.subr.mxu0 0.0
    %1171 = vmatpush1.msra.mxu0 0.0
    %1172 = vmatprep.subr.mxu0 0.0
    %1173 = vmatpush1.msra.mxu0 0.0
    %1174 = vmatprep.subr.mxu0 0.0
    %1175 = vmatpush1.msra.mxu0 0.0
    %1176 = vmatprep.subr.mxu0 0.0
    %1177 = vmatpush1.msra.mxu0 0.0
    %1178 = vmatprep.subr.mxu0 0.0
    %1179 = vmatpush1.msra.mxu0 0.0
    %1180 = vmatprep.subr.mxu0 0.0
    %1181 = vmatpush1.msra.mxu0 0.0
    %1182 = vmatprep.subr.mxu0 0.0
    %1183 = vmatpush1.msra.mxu0 0.0
    %1184 = vmatprep.subr.mxu0 0.0
    %1185 = vmatpush1.msra.mxu0 0.0
    %1186 = vmatprep.subr.mxu0 0.0
    %1187 = vmatpush1.msra.mxu0 0.0
    %1188 = vmatprep.subr.mxu0 0.0
    %1189 = vmatpush1.msra.mxu0 0.0
    %1190 = vmatprep.subr.mxu0 0.0
    %1191 = vmatpush1.msra.mxu0 0.0
    %1192 = vmatprep.subr.mxu0 0.0
    %1193 = vmatpush1.msra.mxu0 0.0
    %1194 = vmatprep.subr.mxu0 0.0
    %1195 = vmatpush1.msra.mxu0 0.0
    %1196 = vmatprep.subr.mxu0 0.0
    %1197 = vmatpush1.msra.mxu0 0.0
    %1198 = vmatprep.mubr.f32.mxu0 0.0
    %1199 = vmatmul.mubr.f32.gmra.mrb[0].mxu0 %v1132
    %v1200 = vpop.f32.mrb[0].mxu0
    %v1201 = vadd.f32 %v44, %v1200
    %v1202 = vpop.f32.mrb[0].mxu0
    %1203 = vdwg.mxu0
    %s1204 = scalar_lea.vmem %s0, 8
    %v1205 = vld [vmem:[%s1204] sm:$0x3]
    %1206 = vmatprep.subr.mxu0 0.0
    %1207 = vmatpush1.msra.mxu0 %v27
    %1208 = vmatprep.subr.mxu0 0.0
    %1209 = vmatpush1.msra.mxu0 %v28
    %1210 = vmatprep.subr.mxu0 0.0
    %1211 = vmatpush1.msra.mxu0 %v29
    %1212 = vmatprep.subr.mxu0 0.0
    %1213 = vmatpush1.msra.mxu0 %v30
    %1214 = vmatprep.subr.mxu0 0.0
    %1215 = vmatpush1.msra.mxu0 0.0
    %1216 = vmatprep.subr.mxu0 0.0
    %1217 = vmatpush1.msra.mxu0 0.0
    %1218 = vmatprep.subr.mxu0 0.0
    %1219 = vmatpush1.msra.mxu0 0.0
    %1220 = vmatprep.subr.mxu0 0.0
    %1221 = vmatpush1.msra.mxu0 0.0
    %1222 = vmatprep.subr.mxu0 0.0
    %1223 = vmatpush1.msra.mxu0 0.0
    %1224 = vmatprep.subr.mxu0 0.0
    %1225 = vmatpush1.msra.mxu0 0.0
    %1226 = vmatprep.subr.mxu0 0.0
    %1227 = vmatpush1.msra.mxu0 0.0
    %1228 = vmatprep.subr.mxu0 0.0
    %1229 = vmatpush1.msra.mxu0 0.0
    %1230 = vmatprep.subr.mxu0 0.0
    %1231 = vmatpush1.msra.mxu0 0.0
    %1232 = vmatprep.subr.mxu0 0.0
    %1233 = vmatpush1.msra.mxu0 0.0
    %1234 = vmatprep.subr.mxu0 0.0
    %1235 = vmatpush1.msra.mxu0 0.0
    %1236 = vmatprep.subr.mxu0 0.0
    %1237 = vmatpush1.msra.mxu0 0.0
    %1238 = vmatprep.subr.mxu0 0.0
    %1239 = vmatpush1.msra.mxu0 0.0
    %1240 = vmatprep.subr.mxu0 0.0
    %1241 = vmatpush1.msra.mxu0 0.0
    %1242 = vmatprep.subr.mxu0 0.0
    %1243 = vmatpush1.msra.mxu0 0.0
    %1244 = vmatprep.subr.mxu0 0.0
    %1245 = vmatpush1.msra.mxu0 0.0
    %1246 = vmatprep.subr.mxu0 0.0
    %1247 = vmatpush1.msra.mxu0 0.0
    %1248 = vmatprep.subr.mxu0 0.0
    %1249 = vmatpush1.msra.mxu0 0.0
    %1250 = vmatprep.subr.mxu0 0.0
    %1251 = vmatpush1.msra.mxu0 0.0
    %1252 = vmatprep.subr.mxu0 0.0
    %1253 = vmatpush1.msra.mxu0 0.0
    %1254 = vmatprep.subr.mxu0 0.0
    %1255 = vmatpush1.msra.mxu0 0.0
    %1256 = vmatprep.subr.mxu0 0.0
    %1257 = vmatpush1.msra.mxu0 0.0
    %1258 = vmatprep.subr.mxu0 0.0
    %1259 = vmatpush1.msra.mxu0 0.0
    %1260 = vmatprep.subr.mxu0 0.0
    %1261 = vmatpush1.msra.mxu0 0.0
    %1262 = vmatprep.subr.mxu0 0.0
    %1263 = vmatpush1.msra.mxu0 0.0
    %1264 = vmatprep.subr.mxu0 0.0
    %1265 = vmatpush1.msra.mxu0 0.0
    %1266 = vmatprep.subr.mxu0 0.0
    %1267 = vmatpush1.msra.mxu0 0.0
    %1268 = vmatprep.subr.mxu0 0.0
    %1269 = vmatpush1.msra.mxu0 0.0
    %1270 = vmatprep.mubr.f32.mxu0 0.0
    %1271 = vmatmul.mubr.f32.gmra.mrb[0].mxu0 %v1033
    %v1272 = vpop.f32.mrb[0].mxu0
    %v1273 = vadd.f32 0.0, %v1272
    %v1274 = vpop.f32.mrb[0].mxu0
    %1275 = vdwg.mxu0
    %v1276 = vadd.f32 %v1205, %v1273
    %v1277 = vmul.f32 %v1276, 0.5
    %v1278 = vsel %vm50, %v1276, %v1277
    %v1279 = vtanh.pop %v1278
    %v1280 = vmul.f32 %v1279, 0.5
    %v1281 = vadd.f32 %v1280, 0.5
    %v1282 = vsel %vm50, %v1279, %v1281
    %v1283 = vmul.f32 %v1282, %v1023
    %1285 = vrot.lane.b32.xlu0 %v1282, 64
    %v1286 = vpop.permute.xlu0 %1285
    %v1288 = vmul.f32 %v1282, %v1286
    %1290 = vrot.lane.b32.xlu0 %v1288, 32
    %v1291 = vpop.permute.xlu0 %1290
    %v1293 = vadd.f32 %v1283, %v1291
    %v1294 = vtanh.pop %v1293
    %1296 = vrot.lane.b32.xlu0 %v1294, 64
    %v1297 = vpop.permute.xlu0 %1296
    %v1299 = vmul.f32 %v1282, %v1297
    %1301 = vrot.lane.b32.xlu0 %v1299, 32
    %v1302 = vpop.permute.xlu0 %1301
    %v1303 = vsel %vm51, %v1302, 0
    %1305 = vmatprep.subr.mxu0 0.0
    %1306 = vmatpush1.msra.mxu0 %v31
    %1307 = vmatprep.subr.mxu0 0.0
    %1308 = vmatpush1.msra.mxu0 %v32
    %1309 = vmatprep.subr.mxu0 0.0
    %1310 = vmatpush1.msra.mxu0 %v33
    %1311 = vmatprep.subr.mxu0 0.0
    %1312 = vmatpush1.msra.mxu0 %v34
    %1313 = vmatprep.subr.mxu0 0.0
    %1314 = vmatpush1.msra.mxu0 0.0
    %1315 = vmatprep.subr.mxu0 0.0
    %1316 = vmatpush1.msra.mxu0 0.0
    %1317 = vmatprep.subr.mxu0 0.0
    %1318 = vmatpush1.msra.mxu0 0.0
    %1319 = vmatprep.subr.mxu0 0.0
    %1320 = vmatpush1.msra.mxu0 0.0
    %1321 = vmatprep.subr.mxu0 0.0
    %1322 = vmatpush1.msra.mxu0 0.0
    %1323 = vmatprep.subr.mxu0 0.0
    %1324 = vmatpush1.msra.mxu0 0.0
    %1325 = vmatprep.subr.mxu0 0.0
    %1326 = vmatpush1.msra.mxu0 0.0
    %1327 = vmatprep.subr.mxu0 0.0
    %1328 = vmatpush1.msra.mxu0 0.0
    %1329 = vmatprep.subr.mxu0 0.0
    %1330 = vmatpush1.msra.mxu0 0.0
    %1331 = vmatprep.subr.mxu0 0.0
    %1332 = vmatpush1.msra.mxu0 0.0
    %1333 = vmatprep.subr.mxu0 0.0
    %1334 = vmatpush1.msra.mxu0 0.0
    %1335 = vmatprep.subr.mxu0 0.0
    %1336 = vmatpush1.msra.mxu0 0.0
    %1337 = vmatprep.subr.mxu0 0.0
    %1338 = vmatpush1.msra.mxu0 0.0
    %1339 = vmatprep.subr.mxu0 0.0
    %1340 = vmatpush1.msra.mxu0 0.0
    %1341 = vmatprep.subr.mxu0 0.0
    %1342 = vmatpush1.msra.mxu0 0.0
    %1343 = vmatprep.subr.mxu0 0.0
    %1344 = vmatpush1.msra.mxu0 0.0
    %1345 = vmatprep.subr.mxu0 0.0
    %1346 = vmatpush1.msra.mxu0 0.0
    %1347 = vmatprep.subr.mxu0 0.0
    %1348 = vmatpush1.msra.mxu0 0.0
    %1349 = vmatprep.subr.mxu0 0.0
    %1350 = vmatpush1.msra.mxu0 0.0
    %1351 = vmatprep.subr.mxu0 0.0
    %1352 = vmatpush1.msra.mxu0 0.0
    %1353 = vmatprep.subr.mxu0 0.0
    %1354 = vmatpush1.msra.mxu0 0.0
    %1355 = vmatprep.subr.mxu0 0.0
    %1356 = vmatpush1.msra.mxu0 0.0
    %1357 = vmatprep.subr.mxu0 0.0
    %1358 = vmatpush1.msra.mxu0 0.0
    %1359 = vmatprep.subr.mxu0 0.0
    %1360 = vmatpush1.msra.mxu0 0.0
    %1361 = vmatprep.subr.mxu0 0.0
    %1362 = vmatpush1.msra.mxu0 0.0
    %1363 = vmatprep.subr.mxu0 0.0
    %1364 = vmatpush1.msra.mxu0 0.0
    %1365 = vmatprep.subr.mxu0 0.0
    %1366 = vmatpush1.msra.mxu0 0.0
    %1367 = vmatprep.subr.mxu0 0.0
    %1368 = vmatpush1.msra.mxu0 0.0
    %1369 = vmatprep.mubr.f32.mxu0 0.0
    %1370 = vmatmul.mubr.f32.gmra.mrb[0].mxu0 %v1303
    %v1371 = vpop.f32.mrb[0].mxu0
    %v1372 = vadd.f32 0.0, %v1371
    %v1373 = vpop.f32.mrb[0].mxu0
    %1374 = vdwg.mxu0
    %v1375 = vadd.f32 %v1201, %v1372
    %v1376 = vmul.f32 %v1375, 0.5
    %v1377 = vsel %vm50, %v1375, %v1376
    %v1378 = vtanh.pop %v1377
    %v1379 = vmul.f32 %v1378, 0.5
    %v1380 = vadd.f32 %v1379, 0.5
    %v1381 = vsel %vm50, %v1378, %v1380
    %v1382 = vmul.f32 %v1381, %v1122
    %1384 = vrot.lane.b32.xlu0 %v1381, 64
    %v1385 = vpop.permute.xlu0 %1384
    %v1387 = vmul.f32 %v1381, %v1385
    %1389 = vrot.lane.b32.xlu0 %v1387, 32
    %v1390 = vpop.permute.xlu0 %1389
    %v1392 = vadd.f32 %v1382, %v1390
    %v1393 = vtanh.pop %v1392
    %1395 = vrot.lane.b32.xlu0 %v1393, 64
    %v1396 = vpop.permute.xlu0 %1395
    %v1398 = vmul.f32 %v1381, %v1396
    %1400 = vrot.lane.b32.xlu0 %v1398, 32
    %v1401 = vpop.permute.xlu0 %1400
    %v1402 = vsel %vm51, %v1401, 0
    %1404 = vmatprep.subr.mxu0 0.0
    %1405 = vmatpush1.msra.mxu0 %v35
    %1406 = vmatprep.subr.mxu0 0.0
    %1407 = vmatpush1.msra.mxu0 %v36
    %1408 = vmatprep.subr.mxu0 0.0
    %1409 = vmatpush1.msra.mxu0 %v37
    %1410 = vmatprep.subr.mxu0 0.0
    %1411 = vmatpush1.msra.mxu0 %v38
    %1412 = vmatprep.subr.mxu0 0.0
    %1413 = vmatpush1.msra.mxu0 0.0
    %1414 = vmatprep.subr.mxu0 0.0
    %1415 = vmatpush1.msra.mxu0 0.0
    %1416 = vmatprep.subr.mxu0 0.0
    %1417 = vmatpush1.msra.mxu0 0.0
    %1418 = vmatprep.subr.mxu0 0.0
    %1419 = vmatpush1.msra.mxu0 0.0
    %1420 = vmatprep.subr.mxu0 0.0
    %1421 = vmatpush1.msra.mxu0 0.0
    %1422 = vmatprep.subr.mxu0 0.0
    %1423 = vmatpush1.msra.mxu0 0.0
    %1424 = vmatprep.subr.mxu0 0.0
    %1425 = vmatpush1.msra.mxu0 0.0
    %1426 = vmatprep.subr.mxu0 0.0
    %1427 = vmatpush1.msra.mxu0 0.0
    %1428 = vmatprep.subr.mxu0 0.0
    %1429 = vmatpush1.msra.mxu0 0.0
    %1430 = vmatprep.subr.mxu0 0.0
    %1431 = vmatpush1.msra.mxu0 0.0
    %1432 = vmatprep.subr.mxu0 0.0
    %1433 = vmatpush1.msra.mxu0 0.0
    %1434 = vmatprep.subr.mxu0 0.0
    %1435 = vmatpush1.msra.mxu0 0.0
    %1436 = vmatprep.subr.mxu0 0.0
    %1437 = vmatpush1.msra.mxu0 0.0
    %1438 = vmatprep.subr.mxu0 0.0
    %1439 = vmatpush1.msra.mxu0 0.0
    %1440 = vmatprep.subr.mxu0 0.0
    %1441 = vmatpush1.msra.mxu0 0.0
    %1442 = vmatprep.subr.mxu0 0.0
    %1443 = vmatpush1.msra.mxu0 0.0
    %1444 = vmatprep.subr.mxu0 0.0
    %1445 = vmatpush1.msra.mxu0 0.0
    %1446 = vmatprep.subr.mxu0 0.0
    %1447 = vmatpush1.msra.mxu0 0.0
    %1448 = vmatprep.subr.mxu0 0.0
    %1449 = vmatpush1.msra.mxu0 0.0
    %1450 = vmatprep.subr.mxu0 0.0
    %1451 = vmatpush1.msra.mxu0 0.0
    %1452 = vmatprep.subr.mxu0 0.0
    %1453 = vmatpush1.msra.mxu0 0.0
    %1454 = vmatprep.subr.mxu0 0.0
    %1455 = vmatpush1.msra.mxu0 0.0
    %1456 = vmatprep.subr.mxu0 0.0
    %1457 = vmatpush1.msra.mxu0 0.0
    %1458 = vmatprep.subr.mxu0 0.0
    %1459 = vmatpush1.msra.mxu0 0.0
    %1460 = vmatprep.subr.mxu0 0.0
    %1461 = vmatpush1.msra.mxu0 0.0
    %1462 = vmatprep.subr.mxu0 0.0
    %1463 = vmatpush1.msra.mxu0 0.0
    %1464 = vmatprep.subr.mxu0 0.0
    %1465 = vmatpush1.msra.mxu0 0.0
    %1466 = vmatprep.subr.mxu0 0.0
    %1467 = vmatpush1.msra.mxu0 0.0
    %1468 = vmatprep.mubr.f32.mxu0 0.0
    %1469 = vmatmul.mubr.f32.gmra.mrb[0].mxu0 %v1402
    %v1470 = vpop.f32.mrb[0].mxu0
    %v1471 = vadd.f32 %v44, %v1470
    %v1472 = vpop.f32.mrb[0].mxu0
    %1473 = vdwg.mxu0
    %s1474 = scalar_lea.vmem %s0, 10
    %v1475 = vld [vmem:[%s1474] sm:$0x3]
    %1476 = vmatprep.subr.mxu0 0.0
    %1477 = vmatpush1.msra.mxu0 %v27
    %1478 = vmatprep.subr.mxu0 0.0
    %1479 = vmatpush1.msra.mxu0 %v28
    %1480 = vmatprep.subr.mxu0 0.0
    %1481 = vmatpush1.msra.mxu0 %v29
    %1482 = vmatprep.subr.mxu0 0.0
    %1483 = vmatpush1.msra.mxu0 %v30
    %1484 = vmatprep.subr.mxu0 0.0
    %1485 = vmatpush1.msra.mxu0 0.0
    %1486 = vmatprep.subr.mxu0 0.0
    %1487 = vmatpush1.msra.mxu0 0.0
    %1488 = vmatprep.subr.mxu0 0.0
    %1489 = vmatpush1.msra.mxu0 0.0
    %1490 = vmatprep.subr.mxu0 0.0
    %1491 = vmatpush1.msra.mxu0 0.0
    %1492 = vmatprep.subr.mxu0 0.0
    %1493 = vmatpush1.msra.mxu0 0.0
    %1494 = vmatprep.subr.mxu0 0.0
    %1495 = vmatpush1.msra.mxu0 0.0
    %1496 = vmatprep.subr.mxu0 0.0
    %1497 = vmatpush1.msra.mxu0 0.0
    %1498 = vmatprep.subr.mxu0 0.0
    %1499 = vmatpush1.msra.mxu0 0.0
    %1500 = vmatprep.subr.mxu0 0.0
    %1501 = vmatpush1.msra.mxu0 0.0
    %1502 = vmatprep.subr.mxu0 0.0
    %1503 = vmatpush1.msra.mxu0 0.0
    %1504 = vmatprep.subr.mxu0 0.0
    %1505 = vmatpush1.msra.mxu0 0.0
    %1506 = vmatprep.subr.mxu0 0.0
    %1507 = vmatpush1.msra.mxu0 0.0
    %1508 = vmatprep.subr.mxu0 0.0
    %1509 = vmatpush1.msra.mxu0 0.0
    %1510 = vmatprep.subr.mxu0 0.0
    %1511 = vmatpush1.msra.mxu0 0.0
    %1512 = vmatprep.subr.mxu0 0.0
    %1513 = vmatpush1.msra.mxu0 0.0
    %1514 = vmatprep.subr.mxu0 0.0
    %1515 = vmatpush1.msra.mxu0 0.0
    %1516 = vmatprep.subr.mxu0 0.0
    %1517 = vmatpush1.msra.mxu0 0.0
    %1518 = vmatprep.subr.mxu0 0.0
    %1519 = vmatpush1.msra.mxu0 0.0
    %1520 = vmatprep.subr.mxu0 0.0
    %1521 = vmatpush1.msra.mxu0 0.0
    %1522 = vmatprep.subr.mxu0 0.0
    %1523 = vmatpush1.msra.mxu0 0.0
    %1524 = vmatprep.subr.mxu0 0.0
    %1525 = vmatpush1.msra.mxu0 0.0
    %1526 = vmatprep.subr.mxu0 0.0
    %1527 = vmatpush1.msra.mxu0 0.0
    %1528 = vmatprep.subr.mxu0 0.0
    %1529 = vmatpush1.msra.mxu0 0.0
    %1530 = vmatprep.subr.mxu0 0.0
    %1531 = vmatpush1.msra.mxu0 0.0
    %1532 = vmatprep.subr.mxu0 0.0
    %1533 = vmatpush1.msra.mxu0 0.0
    %1534 = vmatprep.subr.mxu0 0.0
    %1535 = vmatpush1.msra.mxu0 0.0
    %1536 = vmatprep.subr.mxu0 0.0
    %1537 = vmatpush1.msra.mxu0 0.0
    %1538 = vmatprep.subr.mxu0 0.0
    %1539 = vmatpush1.msra.mxu0 0.0
    %1540 = vmatprep.mubr.f32.mxu0 0.0
    %1541 = vmatmul.mubr.f32.gmra.mrb[0].mxu0 %v1303
    %v1542 = vpop.f32.mrb[0].mxu0
    %v1543 = vadd.f32 0.0, %v1542
    %v1544 = vpop.f32.mrb[0].mxu0
    %1545 = vdwg.mxu0
    %v1546 = vadd.f32 %v1475, %v1543
    %v1547 = vmul.f32 %v1546, 0.5
    %v1548 = vsel %vm50, %v1546, %v1547
    %v1549 = vtanh.pop %v1548
    %v1550 = vmul.f32 %v1549, 0.5
    %v1551 = vadd.f32 %v1550, 0.5
    %v1552 = vsel %vm50, %v1549, %v1551
    %v1553 = vmul.f32 %v1552, %v1293
    %1555 = vrot.lane.b32.xlu0 %v1552, 64
    %v1556 = vpop.permute.xlu0 %1555
    %v1558 = vmul.f32 %v1552, %v1556
    %1560 = vrot.lane.b32.xlu0 %v1558, 32
    %v1561 = vpop.permute.xlu0 %1560
    %v1563 = vadd.f32 %v1553, %v1561
    %v1564 = vtanh.pop %v1563
    %1566 = vrot.lane.b32.xlu0 %v1564, 64
    %v1567 = vpop.permute.xlu0 %1566
    %v1569 = vmul.f32 %v1552, %v1567
    %1571 = vrot.lane.b32.xlu0 %v1569, 32
    %v1572 = vpop.permute.xlu0 %1571
    %v1573 = vsel %vm51, %v1572, 0
    %1575 = vmatprep.subr.mxu0 0.0
    %1576 = vmatpush1.msra.mxu0 %v31
    %1577 = vmatprep.subr.mxu0 0.0
    %1578 = vmatpush1.msra.mxu0 %v32
    %1579 = vmatprep.subr.mxu0 0.0
    %1580 = vmatpush1.msra.mxu0 %v33
    %1581 = vmatprep.subr.mxu0 0.0
    %1582 = vmatpush1.msra.mxu0 %v34
    %1583 = vmatprep.subr.mxu0 0.0
    %1584 = vmatpush1.msra.mxu0 0.0
    %1585 = vmatprep.subr.mxu0 0.0
    %1586 = vmatpush1.msra.mxu0 0.0
    %1587 = vmatprep.subr.mxu0 0.0
    %1588 = vmatpush1.msra.mxu0 0.0
    %1589 = vmatprep.subr.mxu0 0.0
    %1590 = vmatpush1.msra.mxu0 0.0
    %1591 = vmatprep.subr.mxu0 0.0
    %1592 = vmatpush1.msra.mxu0 0.0
    %1593 = vmatprep.subr.mxu0 0.0
    %1594 = vmatpush1.msra.mxu0 0.0
    %1595 = vmatprep.subr.mxu0 0.0
    %1596 = vmatpush1.msra.mxu0 0.0
    %1597 = vmatprep.subr.mxu0 0.0
    %1598 = vmatpush1.msra.mxu0 0.0
    %1599 = vmatprep.subr.mxu0 0.0
    %1600 = vmatpush1.msra.mxu0 0.0
    %1601 = vmatprep.subr.mxu0 0.0
    %1602 = vmatpush1.msra.mxu0 0.0
    %1603 = vmatprep.subr.mxu0 0.0
    %1604 = vmatpush1.msra.mxu0 0.0
    %1605 = vmatprep.subr.mxu0 0.0
    %1606 = vmatpush1.msra.mxu0 0.0
    %1607 = vmatprep.subr.mxu0 0.0
    %1608 = vmatpush1.msra.mxu0 0.0
    %1609 = vmatprep.subr.mxu0 0.0
    %1610 = vmatpush1.msra.mxu0 0.0
    %1611 = vmatprep.subr.mxu0 0.0
    %1612 = vmatpush1.msra.mxu0 0.0
    %1613 = vmatprep.subr.mxu0 0.0
    %1614 = vmatpush1.msra.mxu0 0.0
    %1615 = vmatprep.subr.mxu0 0.0
    %1616 = vmatpush1.msra.mxu0 0.0
    %1617 = vmatprep.subr.mxu0 0.0
    %1618 = vmatpush1.msra.mxu0 0.0
    %1619 = vmatprep.subr.mxu0 0.0
    %1620 = vmatpush1.msra.mxu0 0.0
    %1621 = vmatprep.subr.mxu0 0.0
    %1622 = vmatpush1.msra.mxu0 0.0
    %1623 = vmatprep.subr.mxu0 0.0
    %1624 = vmatpush1.msra.mxu0 0.0
    %1625 = vmatprep.subr.mxu0 0.0
    %1626 = vmatpush1.msra.mxu0 0.0
    %1627 = vmatprep.subr.mxu0 0.0
    %1628 = vmatpush1.msra.mxu0 0.0
    %1629 = vmatprep.subr.mxu0 0.0
    %1630 = vmatpush1.msra.mxu0 0.0
    %1631 = vmatprep.subr.mxu0 0.0
    %1632 = vmatpush1.msra.mxu0 0.0
    %1633 = vmatprep.subr.mxu0 0.0
    %1634 = vmatpush1.msra.mxu0 0.0
    %1635 = vmatprep.subr.mxu0 0.0
    %1636 = vmatpush1.msra.mxu0 0.0
    %1637 = vmatprep.subr.mxu0 0.0
    %1638 = vmatpush1.msra.mxu0 0.0
    %1639 = vmatprep.mubr.f32.mxu0 0.0
    %1640 = vmatmul.mubr.f32.gmra.mrb[0].mxu0 %v1573
    %v1641 = vpop.f32.mrb[0].mxu0
    %v1642 = vadd.f32 0.0, %v1641
    %v1643 = vpop.f32.mrb[0].mxu0
    %1644 = vdwg.mxu0
    %v1645 = vadd.f32 %v1471, %v1642
    %v1646 = vmul.f32 %v1645, 0.5
    %v1647 = vsel %vm50, %v1645, %v1646
    %v1648 = vtanh.pop %v1647
    %v1649 = vmul.f32 %v1648, 0.5
    %v1650 = vadd.f32 %v1649, 0.5
    %v1651 = vsel %vm50, %v1648, %v1650
    %v1652 = vmul.f32 %v1651, %v1392
    %1654 = vrot.lane.b32.xlu0 %v1651, 64
    %v1655 = vpop.permute.xlu0 %1654
    %v1657 = vmul.f32 %v1651, %v1655
    %1659 = vrot.lane.b32.xlu0 %v1657, 32
    %v1660 = vpop.permute.xlu0 %1659
    %v1662 = vadd.f32 %v1652, %v1660
    %v1663 = vtanh.pop %v1662
    %1665 = vrot.lane.b32.xlu0 %v1663, 64
    %v1666 = vpop.permute.xlu0 %1665
    %v1668 = vmul.f32 %v1651, %v1666
    %1670 = vrot.lane.b32.xlu0 %v1668, 32
    %v1671 = vpop.permute.xlu0 %1670
    %v1672 = vsel %vm51, %v1671, 0
    %1674 = vmatprep.subr.mxu0 0.0
    %1675 = vmatpush1.msra.mxu0 %v35
    %1676 = vmatprep.subr.mxu0 0.0
    %1677 = vmatpush1.msra.mxu0 %v36
    %1678 = vmatprep.subr.mxu0 0.0
    %1679 = vmatpush1.msra.mxu0 %v37
    %1680 = vmatprep.subr.mxu0 0.0
    %1681 = vmatpush1.msra.mxu0 %v38
    %1682 = vmatprep.subr.mxu0 0.0
    %1683 = vmatpush1.msra.mxu0 0.0
    %1684 = vmatprep.subr.mxu0 0.0
    %1685 = vmatpush1.msra.mxu0 0.0
    %1686 = vmatprep.subr.mxu0 0.0
    %1687 = vmatpush1.msra.mxu0 0.0
    %1688 = vmatprep.subr.mxu0 0.0
    %1689 = vmatpush1.msra.mxu0 0.0
    %1690 = vmatprep.subr.mxu0 0.0
    %1691 = vmatpush1.msra.mxu0 0.0
    %1692 = vmatprep.subr.mxu0 0.0
    %1693 = vmatpush1.msra.mxu0 0.0
    %1694 = vmatprep.subr.mxu0 0.0
    %1695 = vmatpush1.msra.mxu0 0.0
    %1696 = vmatprep.subr.mxu0 0.0
    %1697 = vmatpush1.msra.mxu0 0.0
    %1698 = vmatprep.subr.mxu0 0.0
    %1699 = vmatpush1.msra.mxu0 0.0
    %1700 = vmatprep.subr.mxu0 0.0
    %1701 = vmatpush1.msra.mxu0 0.0
    %1702 = vmatprep.subr.mxu0 0.0
    %1703 = vmatpush1.msra.mxu0 0.0
    %1704 = vmatprep.subr.mxu0 0.0
    %1705 = vmatpush1.msra.mxu0 0.0
    %1706 = vmatprep.subr.mxu0 0.0
    %1707 = vmatpush1.msra.mxu0 0.0
    %1708 = vmatprep.subr.mxu0 0.0
    %1709 = vmatpush1.msra.mxu0 0.0
    %1710 = vmatprep.subr.mxu0 0.0
    %1711 = vmatpush1.msra.mxu0 0.0
    %1712 = vmatprep.subr.mxu0 0.0
    %1713 = vmatpush1.msra.mxu0 0.0
    %1714 = vmatprep.subr.mxu0 0.0
    %1715 = vmatpush1.msra.mxu0 0.0
    %1716 = vmatprep.subr.mxu0 0.0
    %1717 = vmatpush1.msra.mxu0 0.0
    %1718 = vmatprep.subr.mxu0 0.0
    %1719 = vmatpush1.msra.mxu0 0.0
    %1720 = vmatprep.subr.mxu0 0.0
    %1721 = vmatpush1.msra.mxu0 0.0
    %1722 = vmatprep.subr.mxu0 0.0
    %1723 = vmatpush1.msra.mxu0 0.0
    %1724 = vmatprep.subr.mxu0 0.0
    %1725 = vmatpush1.msra.mxu0 0.0
    %1726 = vmatprep.subr.mxu0 0.0
    %1727 = vmatpush1.msra.mxu0 0.0
    %1728 = vmatprep.subr.mxu0 0.0
    %1729 = vmatpush1.msra.mxu0 0.0
    %1730 = vmatprep.subr.mxu0 0.0
    %1731 = vmatpush1.msra.mxu0 0.0
    %1732 = vmatprep.subr.mxu0 0.0
    %1733 = vmatpush1.msra.mxu0 0.0
    %1734 = vmatprep.subr.mxu0 0.0
    %1735 = vmatpush1.msra.mxu0 0.0
    %1736 = vmatprep.subr.mxu0 0.0
    %1737 = vmatpush1.msra.mxu0 0.0
    %1738 = vmatprep.mubr.f32.mxu0 0.0
    %1739 = vmatmul.mubr.f32.gmra.mrb[0].mxu0 %v1672
    %v1740 = vpop.f32.mrb[0].mxu0
    %v1741 = vadd.f32 %v44, %v1740
    %v1742 = vpop.f32.mrb[0].mxu0
    %1743 = vdwg.mxu0
    %s1744 = scalar_lea.vmem %s0, 12
    %v1745 = vld [vmem:[%s1744] sm:$0x3]
    %1746 = vmatprep.subr.mxu0 0.0
    %1747 = vmatpush1.msra.mxu0 %v27
    %1748 = vmatprep.subr.mxu0 0.0
    %1749 = vmatpush1.msra.mxu0 %v28
    %1750 = vmatprep.subr.mxu0 0.0
    %1751 = vmatpush1.msra.mxu0 %v29
    %1752 = vmatprep.subr.mxu0 0.0
    %1753 = vmatpush1.msra.mxu0 %v30
    %1754 = vmatprep.subr.mxu0 0.0
    %1755 = vmatpush1.msra.mxu0 0.0
    %1756 = vmatprep.subr.mxu0 0.0
    %1757 = vmatpush1.msra.mxu0 0.0
    %1758 = vmatprep.subr.mxu0 0.0
    %1759 = vmatpush1.msra.mxu0 0.0
    %1760 = vmatprep.subr.mxu0 0.0
    %1761 = vmatpush1.msra.mxu0 0.0
    %1762 = vmatprep.subr.mxu0 0.0
    %1763 = vmatpush1.msra.mxu0 0.0
    %1764 = vmatprep.subr.mxu0 0.0
    %1765 = vmatpush1.msra.mxu0 0.0
    %1766 = vmatprep.subr.mxu0 0.0
    %1767 = vmatpush1.msra.mxu0 0.0
    %1768 = vmatprep.subr.mxu0 0.0
    %1769 = vmatpush1.msra.mxu0 0.0
    %1770 = vmatprep.subr.mxu0 0.0
    %1771 = vmatpush1.msra.mxu0 0.0
    %1772 = vmatprep.subr.mxu0 0.0
    %1773 = vmatpush1.msra.mxu0 0.0
    %1774 = vmatprep.subr.mxu0 0.0
    %1775 = vmatpush1.msra.mxu0 0.0
    %1776 = vmatprep.subr.mxu0 0.0
    %1777 = vmatpush1.msra.mxu0 0.0
    %1778 = vmatprep.subr.mxu0 0.0
    %1779 = vmatpush1.msra.mxu0 0.0
    %1780 = vmatprep.subr.mxu0 0.0
    %1781 = vmatpush1.msra.mxu0 0.0
    %1782 = vmatprep.subr.mxu0 0.0
    %1783 = vmatpush1.msra.mxu0 0.0
    %1784 = vmatprep.subr.mxu0 0.0
    %1785 = vmatpush1.msra.mxu0 0.0
    %1786 = vmatprep.subr.mxu0 0.0
    %1787 = vmatpush1.msra.mxu0 0.0
    %1788 = vmatprep.subr.mxu0 0.0
    %1789 = vmatpush1.msra.mxu0 0.0
    %1790 = vmatprep.subr.mxu0 0.0
    %1791 = vmatpush1.msra.mxu0 0.0
    %1792 = vmatprep.subr.mxu0 0.0
    %1793 = vmatpush1.msra.mxu0 0.0
    %1794 = vmatprep.subr.mxu0 0.0
    %1795 = vmatpush1.msra.mxu0 0.0
    %1796 = vmatprep.subr.mxu0 0.0
    %1797 = vmatpush1.msra.mxu0 0.0
    %1798 = vmatprep.subr.mxu0 0.0
    %1799 = vmatpush1.msra.mxu0 0.0
    %1800 = vmatprep.subr.mxu0 0.0
    %1801 = vmatpush1.msra.mxu0 0.0
    %1802 = vmatprep.subr.mxu0 0.0
    %1803 = vmatpush1.msra.mxu0 0.0
    %1804 = vmatprep.subr.mxu0 0.0
    %1805 = vmatpush1.msra.mxu0 0.0
    %1806 = vmatprep.subr.mxu0 0.0
    %1807 = vmatpush1.msra.mxu0 0.0
    %1808 = vmatprep.subr.mxu0 0.0
    %1809 = vmatpush1.msra.mxu0 0.0
    %1810 = vmatprep.mubr.f32.mxu0 0.0
    %1811 = vmatmul.mubr.f32.gmra.mrb[0].mxu0 %v1573
    %v1812 = vpop.f32.mrb[0].mxu0
    %v1813 = vadd.f32 0.0, %v1812
    %v1814 = vpop.f32.mrb[0].mxu0
    %1815 = vdwg.mxu0
    %v1816 = vadd.f32 %v1745, %v1813
    %v1817 = vmul.f32 %v1816, 0.5
    %v1818 = vsel %vm50, %v1816, %v1817
    %v1819 = vtanh.pop %v1818
    %v1820 = vmul.f32 %v1819, 0.5
    %v1821 = vadd.f32 %v1820, 0.5
    %v1822 = vsel %vm50, %v1819, %v1821
    %v1823 = vmul.f32 %v1822, %v1563
    %1825 = vrot.lane.b32.xlu0 %v1822, 64
    %v1826 = vpop.permute.xlu0 %1825
    %v1828 = vmul.f32 %v1822, %v1826
    %1830 = vrot.lane.b32.xlu0 %v1828, 32
    %v1831 = vpop.permute.xlu0 %1830
    %v1833 = vadd.f32 %v1823, %v1831
    %v1834 = vtanh.pop %v1833
    %1836 = vrot.lane.b32.xlu0 %v1834, 64
    %v1837 = vpop.permute.xlu0 %1836
    %v1839 = vmul.f32 %v1822, %v1837
    %1841 = vrot.lane.b32.xlu0 %v1839, 32
    %v1842 = vpop.permute.xlu0 %1841
    %v1843 = vsel %vm51, %v1842, 0
    %1845 = vmatprep.subr.mxu0 0.0
    %1846 = vmatpush1.msra.mxu0 %v31
    %1847 = vmatprep.subr.mxu0 0.0
    %1848 = vmatpush1.msra.mxu0 %v32
    %1849 = vmatprep.subr.mxu0 0.0
    %1850 = vmatpush1.msra.mxu0 %v33
    %1851 = vmatprep.subr.mxu0 0.0
    %1852 = vmatpush1.msra.mxu0 %v34
    %1853 = vmatprep.subr.mxu0 0.0
    %1854 = vmatpush1.msra.mxu0 0.0
    %1855 = vmatprep.subr.mxu0 0.0
    %1856 = vmatpush1.msra.mxu0 0.0
    %1857 = vmatprep.subr.mxu0 0.0
    %1858 = vmatpush1.msra.mxu0 0.0
    %1859 = vmatprep.subr.mxu0 0.0
    %1860 = vmatpush1.msra.mxu0 0.0
    %1861 = vmatprep.subr.mxu0 0.0
    %1862 = vmatpush1.msra.mxu0 0.0
    %1863 = vmatprep.subr.mxu0 0.0
    %1864 = vmatpush1.msra.mxu0 0.0
    %1865 = vmatprep.subr.mxu0 0.0
    %1866 = vmatpush1.msra.mxu0 0.0
    %1867 = vmatprep.subr.mxu0 0.0
    %1868 = vmatpush1.msra.mxu0 0.0
    %1869 = vmatprep.subr.mxu0 0.0
    %1870 = vmatpush1.msra.mxu0 0.0
    %1871 = vmatprep.subr.mxu0 0.0
    %1872 = vmatpush1.msra.mxu0 0.0
    %1873 = vmatprep.subr.mxu0 0.0
    %1874 = vmatpush1.msra.mxu0 0.0
    %1875 = vmatprep.subr.mxu0 0.0
    %1876 = vmatpush1.msra.mxu0 0.0
    %1877 = vmatprep.subr.mxu0 0.0
    %1878 = vmatpush1.msra.mxu0 0.0
    %1879 = vmatprep.subr.mxu0 0.0
    %1880 = vmatpush1.msra.mxu0 0.0
    %1881 = vmatprep.subr.mxu0 0.0
    %1882 = vmatpush1.msra.mxu0 0.0
    %1883 = vmatprep.subr.mxu0 0.0
    %1884 = vmatpush1.msra.mxu0 0.0
    %1885 = vmatprep.subr.mxu0 0.0
    %1886 = vmatpush1.msra.mxu0 0.0
    %1887 = vmatprep.subr.mxu0 0.0
    %1888 = vmatpush1.msra.mxu0 0.0
    %1889 = vmatprep.subr.mxu0 0.0
    %1890 = vmatpush1.msra.mxu0 0.0
    %1891 = vmatprep.subr.mxu0 0.0
    %1892 = vmatpush1.msra.mxu0 0.0
    %1893 = vmatprep.subr.mxu0 0.0
    %1894 = vmatpush1.msra.mxu0 0.0
    %1895 = vmatprep.subr.mxu0 0.0
    %1896 = vmatpush1.msra.mxu0 0.0
    %1897 = vmatprep.subr.mxu0 0.0
    %1898 = vmatpush1.msra.mxu0 0.0
    %1899 = vmatprep.subr.mxu0 0.0
    %1900 = vmatpush1.msra.mxu0 0.0
    %1901 = vmatprep.subr.mxu0 0.0
    %1902 = vmatpush1.msra.mxu0 0.0
    %1903 = vmatprep.subr.mxu0 0.0
    %1904 = vmatpush1.msra.mxu0 0.0
    %1905 = vmatprep.subr.mxu0 0.0
    %1906 = vmatpush1.msra.mxu0 0.0
    %1907 = vmatprep.subr.mxu0 0.0
    %1908 = vmatpush1.msra.mxu0 0.0
    %1909 = vmatprep.mubr.f32.mxu0 0.0
    %1910 = vmatmul.mubr.f32.gmra.mrb[0].mxu0 %v1843
    %v1911 = vpop.f32.mrb[0].mxu0
    %v1912 = vadd.f32 0.0, %v1911
    %v1913 = vpop.f32.mrb[0].mxu0
    %1914 = vdwg.mxu0
    %v1915 = vadd.f32 %v1741, %v1912
    %v1916 = vmul.f32 %v1915, 0.5
    %v1917 = vsel %vm50, %v1915, %v1916
    %v1918 = vtanh.pop %v1917
    %v1919 = vmul.f32 %v1918, 0.5
    %v1920 = vadd.f32 %v1919, 0.5
    %v1921 = vsel %vm50, %v1918, %v1920
    %v1922 = vmul.f32 %v1921, %v1662
    %1924 = vrot.lane.b32.xlu0 %v1921, 64
    %v1925 = vpop.permute.xlu0 %1924
    %v1927 = vmul.f32 %v1921, %v1925
    %1929 = vrot.lane.b32.xlu0 %v1927, 32
    %v1930 = vpop.permute.xlu0 %1929
    %v1932 = vadd.f32 %v1922, %v1930
    %v1933 = vtanh.pop %v1932
    %1935 = vrot.lane.b32.xlu0 %v1933, 64
    %v1936 = vpop.permute.xlu0 %1935
    %v1938 = vmul.f32 %v1921, %v1936
    %1940 = vrot.lane.b32.xlu0 %v1938, 32
    %v1941 = vpop.permute.xlu0 %1940
    %v1942 = vsel %vm51, %v1941, 0
    %1944 = vmatprep.subr.mxu0 0.0
    %1945 = vmatpush1.msra.mxu0 %v35
    %1946 = vmatprep.subr.mxu0 0.0
    %1947 = vmatpush1.msra.mxu0 %v36
    %1948 = vmatprep.subr.mxu0 0.0
    %1949 = vmatpush1.msra.mxu0 %v37
    %1950 = vmatprep.subr.mxu0 0.0
    %1951 = vmatpush1.msra.mxu0 %v38
    %1952 = vmatprep.subr.mxu0 0.0
    %1953 = vmatpush1.msra.mxu0 0.0
    %1954 = vmatprep.subr.mxu0 0.0
    %1955 = vmatpush1.msra.mxu0 0.0
    %1956 = vmatprep.subr.mxu0 0.0
    %1957 = vmatpush1.msra.mxu0 0.0
    %1958 = vmatprep.subr.mxu0 0.0
    %1959 = vmatpush1.msra.mxu0 0.0
    %1960 = vmatprep.subr.mxu0 0.0
    %1961 = vmatpush1.msra.mxu0 0.0
    %1962 = vmatprep.subr.mxu0 0.0
    %1963 = vmatpush1.msra.mxu0 0.0
    %1964 = vmatprep.subr.mxu0 0.0
    %1965 = vmatpush1.msra.mxu0 0.0
    %1966 = vmatprep.subr.mxu0 0.0
    %1967 = vmatpush1.msra.mxu0 0.0
    %1968 = vmatprep.subr.mxu0 0.0
    %1969 = vmatpush1.msra.mxu0 0.0
    %1970 = vmatprep.subr.mxu0 0.0
    %1971 = vmatpush1.msra.mxu0 0.0
    %1972 = vmatprep.subr.mxu0 0.0
    %1973 = vmatpush1.msra.mxu0 0.0
    %1974 = vmatprep.subr.mxu0 0.0
    %1975 = vmatpush1.msra.mxu0 0.0
    %1976 = vmatprep.subr.mxu0 0.0
    %1977 = vmatpush1.msra.mxu0 0.0
    %1978 = vmatprep.subr.mxu0 0.0
    %1979 = vmatpush1.msra.mxu0 0.0
    %1980 = vmatprep.subr.mxu0 0.0
    %1981 = vmatpush1.msra.mxu0 0.0
    %1982 = vmatprep.subr.mxu0 0.0
    %1983 = vmatpush1.msra.mxu0 0.0
    %1984 = vmatprep.subr.mxu0 0.0
    %1985 = vmatpush1.msra.mxu0 0.0
    %1986 = vmatprep.subr.mxu0 0.0
    %1987 = vmatpush1.msra.mxu0 0.0
    %1988 = vmatprep.subr.mxu0 0.0
    %1989 = vmatpush1.msra.mxu0 0.0
    %1990 = vmatprep.subr.mxu0 0.0
    %1991 = vmatpush1.msra.mxu0 0.0
    %1992 = vmatprep.subr.mxu0 0.0
    %1993 = vmatpush1.msra.mxu0 0.0
    %1994 = vmatprep.subr.mxu0 0.0
    %1995 = vmatpush1.msra.mxu0 0.0
    %1996 = vmatprep.subr.mxu0 0.0
    %1997 = vmatpush1.msra.mxu0 0.0
    %1998 = vmatprep.subr.mxu0 0.0
    %1999 = vmatpush1.msra.mxu0 0.0
    %2000 = vmatprep.subr.mxu0 0.0
    %2001 = vmatpush1.msra.mxu0 0.0
    %2002 = vmatprep.subr.mxu0 0.0
    %2003 = vmatpush1.msra.mxu0 0.0
    %2004 = vmatprep.subr.mxu0 0.0
    %2005 = vmatpush1.msra.mxu0 0.0
    %2006 = vmatprep.subr.mxu0 0.0
    %2007 = vmatpush1.msra.mxu0 0.0
    %2008 = vmatprep.mubr.f32.mxu0 0.0
    %2009 = vmatmul.mubr.f32.gmra.mrb[0].mxu0 %v1942
    %v2010 = vpop.f32.mrb[0].mxu0
    %v2011 = vadd.f32 %v44, %v2010
    %v2012 = vpop.f32.mrb[0].mxu0
    %2013 = vdwg.mxu0
    %s2014 = scalar_lea.vmem %s0, 14
    %v2015 = vld [vmem:[%s2014] sm:$0x3]
    %2016 = vmatprep.subr.mxu0 0.0
    %2017 = vmatpush1.msra.mxu0 %v27
    %2018 = vmatprep.subr.mxu0 0.0
    %2019 = vmatpush1.msra.mxu0 %v28
    %2020 = vmatprep.subr.mxu0 0.0
    %2021 = vmatpush1.msra.mxu0 %v29
    %2022 = vmatprep.subr.mxu0 0.0
    %2023 = vmatpush1.msra.mxu0 %v30
    %2024 = vmatprep.subr.mxu0 0.0
    %2025 = vmatpush1.msra.mxu0 0.0
    %2026 = vmatprep.subr.mxu0 0.0
    %2027 = vmatpush1.msra.mxu0 0.0
    %2028 = vmatprep.subr.mxu0 0.0
    %2029 = vmatpush1.msra.mxu0 0.0
    %2030 = vmatprep.subr.mxu0 0.0
    %2031 = vmatpush1.msra.mxu0 0.0
    %2032 = vmatprep.subr.mxu0 0.0
    %2033 = vmatpush1.msra.mxu0 0.0
    %2034 = vmatprep.subr.mxu0 0.0
    %2035 = vmatpush1.msra.mxu0 0.0
    %2036 = vmatprep.subr.mxu0 0.0
    %2037 = vmatpush1.msra.mxu0 0.0
    %2038 = vmatprep.subr.mxu0 0.0
    %2039 = vmatpush1.msra.mxu0 0.0
    %2040 = vmatprep.subr.mxu0 0.0
    %2041 = vmatpush1.msra.mxu0 0.0
    %2042 = vmatprep.subr.mxu0 0.0
    %2043 = vmatpush1.msra.mxu0 0.0
    %2044 = vmatprep.subr.mxu0 0.0
    %2045 = vmatpush1.msra.mxu0 0.0
    %2046 = vmatprep.subr.mxu0 0.0
    %2047 = vmatpush1.msra.mxu0 0.0
    %2048 = vmatprep.subr.mxu0 0.0
    %2049 = vmatpush1.msra.mxu0 0.0
    %2050 = vmatprep.subr.mxu0 0.0
    %2051 = vmatpush1.msra.mxu0 0.0
    %2052 = vmatprep.subr.mxu0 0.0
    %2053 = vmatpush1.msra.mxu0 0.0
    %2054 = vmatprep.subr.mxu0 0.0
    %2055 = vmatpush1.msra.mxu0 0.0
    %2056 = vmatprep.subr.mxu0 0.0
    %2057 = vmatpush1.msra.mxu0 0.0
    %2058 = vmatprep.subr.mxu0 0.0
    %2059 = vmatpush1.msra.mxu0 0.0
    %2060 = vmatprep.subr.mxu0 0.0
    %2061 = vmatpush1.msra.mxu0 0.0
    %2062 = vmatprep.subr.mxu0 0.0
    %2063 = vmatpush1.msra.mxu0 0.0
    %2064 = vmatprep.subr.mxu0 0.0
    %2065 = vmatpush1.msra.mxu0 0.0
    %2066 = vmatprep.subr.mxu0 0.0
    %2067 = vmatpush1.msra.mxu0 0.0
    %2068 = vmatprep.subr.mxu0 0.0
    %2069 = vmatpush1.msra.mxu0 0.0
    %2070 = vmatprep.subr.mxu0 0.0
    %2071 = vmatpush1.msra.mxu0 0.0
    %2072 = vmatprep.subr.mxu0 0.0
    %2073 = vmatpush1.msra.mxu0 0.0
    %2074 = vmatprep.subr.mxu0 0.0
    %2075 = vmatpush1.msra.mxu0 0.0
    %2076 = vmatprep.subr.mxu0 0.0
    %2077 = vmatpush1.msra.mxu0 0.0
    %2078 = vmatprep.subr.mxu0 0.0
    %2079 = vmatpush1.msra.mxu0 0.0
    %2080 = vmatprep.mubr.f32.mxu0 0.0
    %2081 = vmatmul.mubr.f32.gmra.mrb[0].mxu0 %v1843
    %v2082 = vpop.f32.mrb[0].mxu0
    %v2083 = vadd.f32 0.0, %v2082
    %v2084 = vpop.f32.mrb[0].mxu0
    %2085 = vdwg.mxu0
    %v2086 = vadd.f32 %v2015, %v2083
    %v2087 = vmul.f32 %v2086, 0.5
    %v2088 = vsel %vm50, %v2086, %v2087
    %v2089 = vtanh.pop %v2088
    %v2090 = vmul.f32 %v2089, 0.5
    %v2091 = vadd.f32 %v2090, 0.5
    %v2092 = vsel %vm50, %v2089, %v2091
    %v2093 = vmul.f32 %v2092, %v1833
    %2095 = vrot.lane.b32.xlu0 %v2092, 64
    %v2096 = vpop.permute.xlu0 %2095
    %v2098 = vmul.f32 %v2092, %v2096
    %2100 = vrot.lane.b32.xlu0 %v2098, 32
    %v2101 = vpop.permute.xlu0 %2100
    %v2103 = vadd.f32 %v2093, %v2101
    %v2104 = vtanh.pop %v2103
    %2106 = vrot.lane.b32.xlu0 %v2104, 64
    %v2107 = vpop.permute.xlu0 %2106
    %v2109 = vmul.f32 %v2092, %v2107
    %2111 = vrot.lane.b32.xlu0 %v2109, 32
    %v2112 = vpop.permute.xlu0 %2111
    %v2113 = vsel %vm51, %v2112, 0
    %2115 = vmatprep.subr.mxu0 0.0
    %2116 = vmatpush1.msra.mxu0 %v31
    %2117 = vmatprep.subr.mxu0 0.0
    %2118 = vmatpush1.msra.mxu0 %v32
    %2119 = vmatprep.subr.mxu0 0.0
    %2120 = vmatpush1.msra.mxu0 %v33
    %2121 = vmatprep.subr.mxu0 0.0
    %2122 = vmatpush1.msra.mxu0 %v34
    %2123 = vmatprep.subr.mxu0 0.0
    %2124 = vmatpush1.msra.mxu0 0.0
    %2125 = vmatprep.subr.mxu0 0.0
    %2126 = vmatpush1.msra.mxu0 0.0
    %2127 = vmatprep.subr.mxu0 0.0
    %2128 = vmatpush1.msra.mxu0 0.0
    %2129 = vmatprep.subr.mxu0 0.0
    %2130 = vmatpush1.msra.mxu0 0.0
    %2131 = vmatprep.subr.mxu0 0.0
    %2132 = vmatpush1.msra.mxu0 0.0
    %2133 = vmatprep.subr.mxu0 0.0
    %2134 = vmatpush1.msra.mxu0 0.0
    %2135 = vmatprep.subr.mxu0 0.0
    %2136 = vmatpush1.msra.mxu0 0.0
    %2137 = vmatprep.subr.mxu0 0.0
    %2138 = vmatpush1.msra.mxu0 0.0
    %2139 = vmatprep.subr.mxu0 0.0
    %2140 = vmatpush1.msra.mxu0 0.0
    %2141 = vmatprep.subr.mxu0 0.0
    %2142 = vmatpush1.msra.mxu0 0.0
    %2143 = vmatprep.subr.mxu0 0.0
    %2144 = vmatpush1.msra.mxu0 0.0
    %2145 = vmatprep.subr.mxu0 0.0
    %2146 = vmatpush1.msra.mxu0 0.0
    %2147 = vmatprep.subr.mxu0 0.0
    %2148 = vmatpush1.msra.mxu0 0.0
    %2149 = vmatprep.subr.mxu0 0.0
    %2150 = vmatpush1.msra.mxu0 0.0
    %2151 = vmatprep.subr.mxu0 0.0
    %2152 = vmatpush1.msra.mxu0 0.0
    %2153 = vmatprep.subr.mxu0 0.0
    %2154 = vmatpush1.msra.mxu0 0.0
    %2155 = vmatprep.subr.mxu0 0.0
    %2156 = vmatpush1.msra.mxu0 0.0
    %2157 = vmatprep.subr.mxu0 0.0
    %2158 = vmatpush1.msra.mxu0 0.0
    %2159 = vmatprep.subr.mxu0 0.0
    %2160 = vmatpush1.msra.mxu0 0.0
    %2161 = vmatprep.subr.mxu0 0.0
    %2162 = vmatpush1.msra.mxu0 0.0
    %2163 = vmatprep.subr.mxu0 0.0
    %2164 = vmatpush1.msra.mxu0 0.0
    %2165 = vmatprep.subr.mxu0 0.0
    %2166 = vmatpush1.msra.mxu0 0.0
    %2167 = vmatprep.subr.mxu0 0.0
    %2168 = vmatpush1.msra.mxu0 0.0
    %2169 = vmatprep.subr.mxu0 0.0
    %2170 = vmatpush1.msra.mxu0 0.0
    %2171 = vmatprep.subr.mxu0 0.0
    %2172 = vmatpush1.msra.mxu0 0.0
    %2173 = vmatprep.subr.mxu0 0.0
    %2174 = vmatpush1.msra.mxu0 0.0
    %2175 = vmatprep.subr.mxu0 0.0
    %2176 = vmatpush1.msra.mxu0 0.0
    %2177 = vmatprep.subr.mxu0 0.0
    %2178 = vmatpush1.msra.mxu0 0.0
    %2179 = vmatprep.mubr.f32.mxu0 0.0
    %2180 = vmatmul.mubr.f32.gmra.mrb[0].mxu0 %v2113
    %v2181 = vpop.f32.mrb[0].mxu0
    %v2182 = vadd.f32 0.0, %v2181
    %v2183 = vpop.f32.mrb[0].mxu0
    %2184 = vdwg.mxu0
    %v2185 = vadd.f32 %v2011, %v2182
    %v2186 = vmul.f32 %v2185, 0.5
    %v2187 = vsel %vm50, %v2185, %v2186
    %v2188 = vtanh.pop %v2187
    %v2189 = vmul.f32 %v2188, 0.5
    %v2190 = vadd.f32 %v2189, 0.5
    %v2191 = vsel %vm50, %v2188, %v2190
    %v2192 = vmul.f32 %v2191, %v1932
    %2194 = vrot.lane.b32.xlu0 %v2191, 64
    %v2195 = vpop.permute.xlu0 %2194
    %v2197 = vmul.f32 %v2191, %v2195
    %2199 = vrot.lane.b32.xlu0 %v2197, 32
    %v2200 = vpop.permute.xlu0 %2199
    %v2202 = vadd.f32 %v2192, %v2200
    %v2203 = vtanh.pop %v2202
    %2205 = vrot.lane.b32.xlu0 %v2203, 64
    %v2206 = vpop.permute.xlu0 %2205
    %v2208 = vmul.f32 %v2191, %v2206
    %v2209 = vld [vmem:[%s5] sm:$0xff]
    %v2210 = vld [vmem:[%s5 + $0x8] sm:$0xff]
    %v2211 = vld [vmem:[%s5 + $0x10] sm:$0xff]
    %v2212 = vld [vmem:[%s5 + $0x18] sm:$0xff]
    %v2213 = vld [vmem:[%s6] sm:$0x1]
    %v2215 = vlaneseq
    %v2216 = vshrl.u32 %v2215, 7
    %v2217 = vsub.s32 0, %v2216
    %v2218 = vrot.slane %v2213, %v2217
    %2221 = vrot.lane.b32.xlu0 %v2208, 32
    %v2222 = vpop.permute.xlu0 %2221
    %v2223 = vsel %vm51, %v2222, 0
    %2225 = vmatprep.subr.mxu0 0.0
    %2226 = vmatpush1.msra.mxu0 %v2209
    %2227 = vmatprep.subr.mxu0 0.0
    %2228 = vmatpush1.msra.mxu0 %v2210
    %2229 = vmatprep.subr.mxu0 0.0
    %2230 = vmatpush1.msra.mxu0 %v2211
    %2231 = vmatprep.subr.mxu0 0.0
    %2232 = vmatpush1.msra.mxu0 %v2212
    %2233 = vmatprep.subr.mxu0 0.0
    %2234 = vmatpush1.msra.mxu0 0.0
    %2235 = vmatprep.subr.mxu0 0.0
    %2236 = vmatpush1.msra.mxu0 0.0
    %2237 = vmatprep.subr.mxu0 0.0
    %2238 = vmatpush1.msra.mxu0 0.0
    %2239 = vmatprep.subr.mxu0 0.0
    %2240 = vmatpush1.msra.mxu0 0.0
    %2241 = vmatprep.subr.mxu0 0.0
    %2242 = vmatpush1.msra.mxu0 0.0
    %2243 = vmatprep.subr.mxu0 0.0
    %2244 = vmatpush1.msra.mxu0 0.0
    %2245 = vmatprep.subr.mxu0 0.0
    %2246 = vmatpush1.msra.mxu0 0.0
    %2247 = vmatprep.subr.mxu0 0.0
    %2248 = vmatpush1.msra.mxu0 0.0
    %2249 = vmatprep.subr.mxu0 0.0
    %2250 = vmatpush1.msra.mxu0 0.0
    %2251 = vmatprep.subr.mxu0 0.0
    %2252 = vmatpush1.msra.mxu0 0.0
    %2253 = vmatprep.subr.mxu0 0.0
    %2254 = vmatpush1.msra.mxu0 0.0
    %2255 = vmatprep.subr.mxu0 0.0
    %2256 = vmatpush1.msra.mxu0 0.0
    %2257 = vmatprep.subr.mxu0 0.0
    %2258 = vmatpush1.msra.mxu0 0.0
    %2259 = vmatprep.subr.mxu0 0.0
    %2260 = vmatpush1.msra.mxu0 0.0
    %2261 = vmatprep.subr.mxu0 0.0
    %2262 = vmatpush1.msra.mxu0 0.0
    %2263 = vmatprep.subr.mxu0 0.0
    %2264 = vmatpush1.msra.mxu0 0.0
    %2265 = vmatprep.subr.mxu0 0.0
    %2266 = vmatpush1.msra.mxu0 0.0
    %2267 = vmatprep.subr.mxu0 0.0
    %2268 = vmatpush1.msra.mxu0 0.0
    %2269 = vmatprep.subr.mxu0 0.0
    %2270 = vmatpush1.msra.mxu0 0.0
    %2271 = vmatprep.subr.mxu0 0.0
    %2272 = vmatpush1.msra.mxu0 0.0
    %2273 = vmatprep.subr.mxu0 0.0
    %2274 = vmatpush1.msra.mxu0 0.0
    %2275 = vmatprep.subr.mxu0 0.0
    %2276 = vmatpush1.msra.mxu0 0.0
    %2277 = vmatprep.subr.mxu0 0.0
    %2278 = vmatpush1.msra.mxu0 0.0
    %2279 = vmatprep.subr.mxu0 0.0
    %2280 = vmatpush1.msra.mxu0 0.0
    %2281 = vmatprep.subr.mxu0 0.0
    %2282 = vmatpush1.msra.mxu0 0.0
    %2283 = vmatprep.subr.mxu0 0.0
    %2284 = vmatpush1.msra.mxu0 0.0
    %2285 = vmatprep.subr.mxu0 0.0
    %2286 = vmatpush1.msra.mxu0 0.0
    %2287 = vmatprep.subr.mxu0 0.0
    %2288 = vmatpush1.msra.mxu0 0.0
    %2289 = vmatprep.mubr.f32.mxu0 0.0
    %2290 = vmatmul.mubr.f32.gmra.mrb[0].mxu0 %v2223
    %v2291 = vpop.f32.mrb[0].mxu0
    %v2292 = vadd.f32 %v2218, %v2291
    %v2293 = vpop.f32.mrb[0].mxu0
    %2294 = vdwg.mxu0
    %2295 = vst [vmem:[#allocation2] sm:$0x3] %v2292
    // Predicated region
    $region30: #{seq_lstm_forward.1} parent=1 // pred_check
      _
    $region31: #{seq_lstm_forward.1} parent=1 // pred_check_branch
      %2297 = sbr.rel (0) target = $region33
    $region32: #{seq_lstm_forward.1} parent=1 // pred_region
      %s2299 = ssub.s32 32, 32
      %2300 = vsyncadd [#allocation3], %s2299
      %s2302 = sshll.u32 [#allocation2], 4
      %s2303 = int_to_ptr.vmem [resolvable:$true] %s2302
      %2305 = dma.vmem_to_hbm [thread:$0]  %s2303, 32, %s7, [#allocation3]
    $region33: #{seq_lstm_forward.1} parent=1 // pred_fallthru
      _
    // Predicated region
    $region34: #{seq_lstm_forward.1} parent=1 // pred_check
      _
    $region35: #{seq_lstm_forward.1} parent=1 // pred_check_branch
      %2307 = sbr.rel (0) target = $region37
    $region36: #{seq_lstm_forward.1} parent=1 // pred_region
      %2308 = dma.done [#allocation3], 32
    $region37: #{seq_lstm_forward.1} parent=1 // pred_fallthru
      _
    %2309 = vsyncpa [#allocation3], 1

</llo_original>
